<compile_context>
chip_gen: v6e
topology: v6e:2x2x1
jax: 0.10.0
libtpu: 0.0.40
codegen_flags: <defaults>
</compile_context>

<pallas_src>
import math

import jax
import jax.numpy as jnp
from jax import lax
from jax.experimental import pallas as pl
from jax.experimental.pallas import tpu as pltpu


# ----------------------------------------------------------------------------
# Fused Pallas kernel
# ----------------------------------------------------------------------------

def _gin_kernel(a_ref, v_ref, w1_ref, b1_ref, w2_ref, b2_ref, o_ref, acc_ref):
    """Grid = (row tiles i, contraction tiles k).

    a_ref : (tm, tk)       adjacency tile (eps already folded into the diagonal), bf16
    v_ref : (tk, D_in)     node-feature tile along the contraction axis, bf16
    w1/b1 : (D_in, H) bf16, (1, H) f32       Linear1 with BN1 folded in
    w2/b2 : (H, D_out) bf16, (1, D_out) f32  Linear2 with BN2 folded in
    o_ref : (tm, D_out)    resident across the k axis (constant output block index)
    acc_ref: (tm, D_in) f32 VMEM accumulator for the aggregation matmul
    """
    k = pl.program_id(1)

    @pl.when(k == 0)
    def _init():
        acc_ref[...] = jnp.zeros_like(acc_ref)

    # Partial aggregation:  acc += A[i, k-tile] @ V[k-tile]   (bf16 MXU, f32 accumulate)
    acc_ref[...] += jnp.dot(a_ref[...], v_ref[...],
                            preferred_element_type=jnp.float32)

    @pl.when(k == pl.num_programs(1) - 1)
    def _epilogue():
        agg = acc_ref[...]
        # Linear1 (+ folded BN1) -> ReLU   (bf16 MXU operands, f32 elementwise)
        h = jnp.dot(agg.astype(w1_ref.dtype), w1_ref[...],
                    preferred_element_type=jnp.float32) + b1_ref[...]
        h = jnp.maximum(h, 0.0)
        # Linear2 (+ folded BN2) -> ReLU
        o = jnp.dot(h.astype(w2_ref.dtype), w2_ref[...],
                    preferred_element_type=jnp.float32) + b2_ref[...]
        o = jnp.maximum(o, 0.0)
        o_ref[...] = o.astype(o_ref.dtype)


# ----------------------------------------------------------------------------
# Wrapper
# ----------------------------------------------------------------------------

def _round_up(n, m):
    return ((n + m - 1) // m) * m


def _nbytes(shape, dtype):
    return math.prod(shape) * jnp.dtype(dtype).itemsize


def layer_gin_forward(v, a, params, *, tm=256, tk=512, bn_eps=1e-5,
                      mxu_dtype=jnp.bfloat16):
    """v: (N, D_in) node features, a: (N, N) dense adjacency. Returns (N, D_out)."""
    N, D_in = v.shape
    H = params["w1"].shape[0]
    D_out = params["w2"].shape[0]
    out_dtype = v.dtype

    # ---- fold eval-mode BN into the linears:  BN(xW^T + b) = x(W^T*s) + (b*s + t)
    s1 = params["bn1_g"] * lax.rsqrt(params["bn1_rv"] + bn_eps)
    t1 = params["bn1_b"] - params["bn1_rm"] * s1
    w1_eff = (params["w1"].T * s1[None, :]).astype(jnp.float32)      # (D_in, H)
    b1_eff = (params["b1"] * s1 + t1).reshape(1, H).astype(jnp.float32)

    s2 = params["bn2_g"] * lax.rsqrt(params["bn2_rv"] + bn_eps)
    t2 = params["bn2_b"] - params["bn2_rm"] * s2
    w2_eff = (params["w2"].T * s2[None, :]).astype(jnp.float32)      # (H, D_out)
    b2_eff = (params["b2"] * s2 + t2).reshape(1, D_out).astype(jnp.float32)

    # ---- fold epsilon into the adjacency diagonal:  A_eff = A + eps*I
    eps = jnp.asarray(params["epsilon"], jnp.float32).reshape(())
    a_eff = a.astype(jnp.float32) + eps * jnp.eye(N, dtype=jnp.float32)

    # ---- tile sizes + padded shapes (lane/sublane dense, N divisible by tm and tk)
    n128 = _round_up(N, 128)
    tm = max(128, min(_round_up(tm, 128), n128))
    tk = max(128, min(_round_up(tk, 128), n128))
    if max(tm, tk) % min(tm, tk) != 0:        # keep lcm(tm, tk) == max(tm, tk)
        tk = tm
    N_pad = _round_up(N, max(tm, tk))

    D_in_p = _round_up(D_in, 128)
    H_p = _round_up(H, 128)
    D_out_p = _round_up(D_out, 128)

    # ---- pad + cast MXU operands to bf16 (f32 accumulation inside the kernel)
    a_p = jnp.pad(a_eff, ((0, N_pad - N), (0, N_pad - N))).astype(mxu_dtype)
    v_p = jnp.pad(v.astype(jnp.float32),
                  ((0, N_pad - N), (0, D_in_p - D_in))).astype(mxu_dtype)
    w1_p = jnp.pad(w1_eff, ((0, D_in_p - D_in), (0, H_p - H))).astype(mxu_dtype)
    b1_p = jnp.pad(b1_eff, ((0, 0), (0, H_p - H)))
    w2_p = jnp.pad(w2_eff, ((0, H_p - H), (0, D_out_p - D_out))).astype(mxu_dtype)
    b2_p = jnp.pad(b2_eff, ((0, 0), (0, D_out_p - D_out)))

    grid = (N_pad // tm, N_pad // tk)

    # ---- scoped VMEM budget from actual buffer sizes (+ headroom)
    vmem_bytes = (
        2 * _nbytes((tm, tk), mxu_dtype)            # A tile (double-buffered)
        + 2 * _nbytes((tk, D_in_p), mxu_dtype)      # V tile (double-buffered)
        + 1 * _nbytes((D_in_p, H_p), mxu_dtype)     # W1 (single-buffered, invariant)
        + 1 * _nbytes((8, H_p), jnp.float32)        # b1 (sublane-padded)
        + 1 * _nbytes((H_p, D_out_p), mxu_dtype)    # W2
        + 1 * _nbytes((8, D_out_p), jnp.float32)    # b2
        + 2 * _nbytes((tm, D_out_p), out_dtype)     # output tile
        + 1 * _nbytes((tm, D_in_p), jnp.float32)    # accumulator scratch
    )
    vmem_limit = int(min(2 * vmem_bytes + (2 << 20), 64 << 20))

    const = pl.Buffered(1)   # invariant blocks: no double-buffering

    out = pl.pallas_call(
        _gin_kernel,
        grid=grid,
        out_shape=jax.ShapeDtypeStruct((N_pad, D_out_p), out_dtype),
        in_specs=[
            pl.BlockSpec((tm, tk), lambda i, k: (i, k)),                 # A row/k tile
            pl.BlockSpec((tk, D_in_p), lambda i, k: (k, 0)),             # V k tile
            pl.BlockSpec((D_in_p, H_p), lambda i, k: (0, 0), pipeline_mode=const),
            pl.BlockSpec((1, H_p), lambda i, k: (0, 0), pipeline_mode=const),
            pl.BlockSpec((H_p, D_out_p), lambda i, k: (0, 0), pipeline_mode=const),
            pl.BlockSpec((1, D_out_p), lambda i, k: (0, 0), pipeline_mode=const),
        ],
        out_specs=pl.BlockSpec((tm, D_out_p), lambda i, k: (i, 0)),
        scratch_shapes=[pltpu.VMEM((tm, D_in_p), jnp.float32)],
        compiler_params=pltpu.CompilerParams(
            dimension_semantics=("parallel", "arbitrary"),
            vmem_limit_bytes=vmem_limit),
    )(a_p, v_p, w1_p, b1_p, w2_p, b2_p)

    return out[:N, :D_out]


# ----------------------------------------------------------------------------
# Pure-JAX reference (same math, unfolded BN, full f32) for a sanity check
# ----------------------------------------------------------------------------

def reference_forward(v, a, params, *, bn_eps=1e-5):
    hi = lax.Precision.HIGHEST
    agg = jnp.dot(a, v, precision=hi) + params["epsilon"] * v
    x = jnp.dot(agg, params["w1"].T, precision=hi) + params["b1"]
    x = (x - params["bn1_rm"]) / jnp.sqrt(params["bn1_rv"] + bn_eps) \
        * params["bn1_g"] + params["bn1_b"]
    x = jnp.maximum(x, 0.0)
    x = jnp.dot(x, params["w2"].T, precision=hi) + params["b2"]
    x = (x - params["bn2_rm"]) / jnp.sqrt(params["bn2_rv"] + bn_eps) \
        * params["bn2_g"] + params["bn2_b"]
    x = jnp.maximum(x, 0.0)
    return x


# ----------------------------------------------------------------------------
# Main
# ----------------------------------------------------------------------------

if __name__ == "__main__":
    # Small shapes consistent with the module, sized so the grid has
    # multiple row tiles (v7x megacore) and multiple k tiles (accumulator path):
    #   N nodes = 512, input_dim = 128, hidden_dim = 256, output_dim = 128
    N, D_IN, HID, D_OUT = 512, 128, 256, 128

    key = jax.random.PRNGKey(0)
    ks = jax.random.split(key, 16)

    # Dense 0/1 adjacency (stand-in for the sparse matrix) + self loops.
    a = (jax.random.uniform(ks[0], (N, N)) < 0.06).astype(jnp.float32)
    a = jnp.maximum(a, jnp.eye(N, dtype=jnp.float32))
    v = jax.random.normal(ks[1], (N, D_IN), jnp.float32)

    params = {
        # learnable epsilon, shape (1, 1) like nn.Parameter(torch.Tensor([[0.0]]))
        "epsilon": jnp.full((1, 1), 0.25, jnp.float32),
        # Linear(input_dim, hidden_dim): weight (H, D_in), bias (H,)
        "w1": jax.random.normal(ks[2], (HID, D_IN), jnp.float32) * 0.05,
        "b1": jax.random.normal(ks[3], (HID,), jnp.float32) * 0.02,
        # BatchNorm1d(hidden_dim) — eval-mode running stats
        "bn1_g": 1.0 + jax.random.normal(ks[4], (HID,), jnp.float32) * 0.1,
        "bn1_b": jax.random.normal(ks[5], (HID,), jnp.float32) * 0.1,
        "bn1_rm": jax.random.normal(ks[6], (HID,), jnp.float32) * 0.1,
        "bn1_rv": 0.5 + jnp.abs(jax.random.normal(ks[7], (HID,), jnp.float32)) * 0.5,
        # Linear(hidden_dim, output_dim): weight (D_out, H), bias (D_out,)
        "w2": jax.random.normal(ks[8], (D_OUT, HID), jnp.float32) * 0.05,
        "b2": jax.random.normal(ks[9], (D_OUT,), jnp.float32) * 0.02,
        # BatchNorm1d(output_dim)
        "bn2_g": 1.0 + jax.random.normal(ks[10], (D_OUT,), jnp.float32) * 0.1,
        "bn2_b": jax.random.normal(ks[11], (D_OUT,), jnp.float32) * 0.1,
        "bn2_rm": jax.random.normal(ks[12], (D_OUT,), jnp.float32) * 0.1,
        "bn2_rv": 0.5 + jnp.abs(jax.random.normal(ks[13], (D_OUT,), jnp.float32)) * 0.5,
    }

    # tm=tk=256 -> grid (2, 2): exercises both the parallel row axis and the
    # k-accumulation axis at demo scale.
    y = layer_gin_forward(v, a, params, tm=256, tk=256)
    y = jax.block_until_ready(y)

    y_ref = reference_forward(v, a, params)
    assert y.shape == (N, D_OUT)
    # bf16 MXU operands vs HIGHEST-precision f32 reference: check relative L2 error.
    rel_err = jnp.linalg.norm(y.astype(jnp.float32) - y_ref) / (jnp.linalg.norm(y_ref) + 1e-6)
    assert float(rel_err) < 5e-2, float(rel_err)

    print("KERNEL_OK")
</pallas_src>

<mosaic_0001>
module attributes {stable_mosaic.version = 11 : i64} {
  func.func @_gin_kernel(%arg0: i32, %arg1: i32, %arg2: memref<256x256xbf16, #tpu.memory_space<vmem>>, %arg3: memref<256x128xbf16, #tpu.memory_space<vmem>>, %arg4: memref<128x256xbf16, #tpu.memory_space<vmem>>, %arg5: memref<1x256xf32, #tpu.memory_space<vmem>>, %arg6: memref<256x128xbf16, #tpu.memory_space<vmem>>, %arg7: memref<1x128xf32, #tpu.memory_space<vmem>>, %arg8: memref<256x128xf32, #tpu.memory_space<vmem>>, %arg9: memref<256x128xf32, #tpu.memory_space<vmem>>) attributes {dimension_semantics = [#tpu.dimension_semantics<parallel>, #tpu.dimension_semantics<arbitrary>], iteration_bounds = array<i64: 2, 2>, scalar_prefetch = 0 : i64, scratch_operands = 1 : i64, tpu.core_type = #tpu.core_type<tc>, window_params = [{transform_indices = @transform_0, window_bounds = array<i64: 256, 256>}, {transform_indices = @transform_1, window_bounds = array<i64: 256, 128>}, {pipeline_mode = #tpu.pipeline_mode<synchronous>, transform_indices = @transform_2, window_bounds = array<i64: 128, 256>}, {pipeline_mode = #tpu.pipeline_mode<synchronous>, transform_indices = @transform_3, window_bounds = array<i64: 1, 256>}, {pipeline_mode = #tpu.pipeline_mode<synchronous>, transform_indices = @transform_4, window_bounds = array<i64: 256, 128>}, {pipeline_mode = #tpu.pipeline_mode<synchronous>, transform_indices = @transform_5, window_bounds = array<i64: 1, 128>}, {transform_indices = @transform_6, window_bounds = array<i64: 256, 128>}]} {
    %c0_i32 = arith.constant 0 : i32
    %0 = arith.cmpi eq, %arg1, %c0_i32 : i32
    %1 = arith.extui %0 : i1 to i32
    %c0_i32_0 = arith.constant 0 : i32
    %2 = arith.cmpi ne, %1, %c0_i32_0 : i32
    scf.if %2 {
      %cst_9 = arith.constant 0.000000e+00 : f32
      %12 = vector.broadcast %cst_9 : f32 to vector<256x128xf32>
      %c0_10 = arith.constant 0 : index
      %c0_11 = arith.constant 0 : index
      %13 = vector.load %arg9[%c0_10, %c0_11] : memref<256x128xf32, #tpu.memory_space<vmem>>, vector<256x128xf32>
      tpu.vector_store %arg9[%c0_10, %c0_11], %12 {strides = array<i32>} : memref<256x128xf32, #tpu.memory_space<vmem>>, vector<256x128xf32>,
    } else {
    }
    %c0 = arith.constant 0 : index
    %c0_1 = arith.constant 0 : index
    %3 = vector.load %arg9[%c0, %c0_1] : memref<256x128xf32, #tpu.memory_space<vmem>>, vector<256x128xf32>
    %c0_2 = arith.constant 0 : index
    %c0_3 = arith.constant 0 : index
    %4 = vector.load %arg2[%c0_2, %c0_3] : memref<256x256xbf16, #tpu.memory_space<vmem>>, vector<256x256xbf16>
    %c0_4 = arith.constant 0 : index
    %c0_5 = arith.constant 0 : index
    %5 = vector.load %arg3[%c0_4, %c0_5] : memref<256x128xbf16, #tpu.memory_space<vmem>>, vector<256x128xbf16>
    %cst = arith.constant dense<0.000000e+00> : vector<256x128xf32>
    %6 = tpu.matmul %4, %5, %cst {dimension_numbers = #tpu.dot_dimension_numbers<[1], [0], [0], [1], [0, 0, 1, 1], [], []>} : vector<256x256xbf16>, vector<256x128xbf16>, vector<256x128xf32> -> vector<256x128xf32>
    %7 = arith.addf %3, %6 : vector<256x128xf32>
    %c0_6 = arith.constant 0 : index
    %c0_7 = arith.constant 0 : index
    %8 = vector.load %arg9[%c0_6, %c0_7] : memref<256x128xf32, #tpu.memory_space<vmem>>, vector<256x128xf32>
    tpu.vector_store %arg9[%c0_6, %c0_7], %7 {strides = array<i32>} : memref<256x128xf32, #tpu.memory_space<vmem>>, vector<256x128xf32>,
    %c1_i32 = arith.constant 1 : i32
    %9 = arith.cmpi eq, %arg1, %c1_i32 : i32
    %10 = arith.extui %9 : i1 to i32
    %c0_i32_8 = arith.constant 0 : i32
    %11 = arith.cmpi ne, %10, %c0_i32_8 : i32
    scf.if %11 {
      %c0_9 = arith.constant 0 : index
      %c0_10 = arith.constant 0 : index
      %12 = vector.load %arg9[%c0_9, %c0_10] : memref<256x128xf32, #tpu.memory_space<vmem>>, vector<256x128xf32>
      %13 = arith.truncf %12 : vector<256x128xf32> to vector<256x128xbf16>
      %c0_11 = arith.constant 0 : index
      %c0_12 = arith.constant 0 : index
      %14 = vector.load %arg4[%c0_11, %c0_12] : memref<128x256xbf16, #tpu.memory_space<vmem>>, vector<128x256xbf16>
      %cst_13 = arith.constant dense<0.000000e+00> : vector<256x256xf32>
      %15 = tpu.matmul %13, %14, %cst_13 {dimension_numbers = #tpu.dot_dimension_numbers<[1], [0], [0], [1], [0, 0, 1, 1], [], []>} : vector<256x128xbf16>, vector<128x256xbf16>, vector<256x256xf32> -> vector<256x256xf32>
      %c0_14 = arith.constant 0 : index
      %c0_15 = arith.constant 0 : index
      %16 = vector.load %arg5[%c0_14, %c0_15] : memref<1x256xf32, #tpu.memory_space<vmem>>, vector<1x256xf32>
      %17 = vector.broadcast %16 : vector<1x256xf32> to vector<256x256xf32>
      %18 = arith.addf %15, %17 : vector<256x256xf32>
      %cst_16 = arith.constant 0.000000e+00 : f32
      %19 = vector.broadcast %cst_16 : f32 to vector<256x256xf32>
      %20 = arith.maximumf %18, %19 : vector<256x256xf32>
      %21 = arith.truncf %20 : vector<256x256xf32> to vector<256x256xbf16>
      %c0_17 = arith.constant 0 : index
      %c0_18 = arith.constant 0 : index
      %22 = vector.load %arg6[%c0_17, %c0_18] : memref<256x128xbf16, #tpu.memory_space<vmem>>, vector<256x128xbf16>
      %cst_19 = arith.constant dense<0.000000e+00> : vector<256x128xf32>
      %23 = tpu.matmul %21, %22, %cst_19 {dimension_numbers = #tpu.dot_dimension_numbers<[1], [0], [0], [1], [0, 0, 1, 1], [], []>} : vector<256x256xbf16>, vector<256x128xbf16>, vector<256x128xf32> -> vector<256x128xf32>
      %c0_20 = arith.constant 0 : index
      %c0_21 = arith.constant 0 : index
      %24 = vector.load %arg7[%c0_20, %c0_21] : memref<1x128xf32, #tpu.memory_space<vmem>>, vector<1x128xf32>
      %25 = vector.broadcast %24 : vector<1x128xf32> to vector<256x128xf32>
      %26 = arith.addf %23, %25 : vector<256x128xf32>
      %cst_22 = arith.constant 0.000000e+00 : f32
      %27 = vector.broadcast %cst_22 : f32 to vector<256x128xf32>
      %28 = arith.maximumf %26, %27 : vector<256x128xf32>
      %c0_23 = arith.constant 0 : index
      %c0_24 = arith.constant 0 : index
      %29 = vector.load %arg8[%c0_23, %c0_24] : memref<256x128xf32, #tpu.memory_space<vmem>>, vector<256x128xf32>
      tpu.vector_store %arg8[%c0_23, %c0_24], %28 {strides = array<i32>} : memref<256x128xf32, #tpu.memory_space<vmem>>, vector<256x128xf32>,
    } else {
    }
    return
  }
  func.func @transform_0(%arg0: i32, %arg1: i32) -> (i32, i32) {
    %c0_i32 = arith.constant 0 : i32
    return %arg0, %arg1 : i32, i32
  }
  func.func @transform_1(%arg0: i32, %arg1: i32) -> (i32, i32) {
    %c0_i32 = arith.constant 0 : i32
    %c0_i32_0 = arith.constant 0 : i32
    return %arg1, %c0_i32 : i32, i32
  }
  func.func @transform_2(%arg0: i32, %arg1: i32) -> (i32, i32) {
    %c0_i32 = arith.constant 0 : i32
    %c0_i32_0 = arith.constant 0 : i32
    %c0_i32_1 = arith.constant 0 : i32
    return %c0_i32, %c0_i32_0 : i32, i32
  }
  func.func @transform_3(%arg0: i32, %arg1: i32) -> (i32, i32) {
    %c0_i32 = arith.constant 0 : i32
    %c0_i32_0 = arith.constant 0 : i32
    %c0_i32_1 = arith.constant 0 : i32
    return %c0_i32, %c0_i32_0 : i32, i32
  }
  func.func @transform_4(%arg0: i32, %arg1: i32) -> (i32, i32) {
    %c0_i32 = arith.constant 0 : i32
    %c0_i32_0 = arith.constant 0 : i32
    %c0_i32_1 = arith.constant 0 : i32
    return %c0_i32, %c0_i32_0 : i32, i32
  }
  func.func @transform_5(%arg0: i32, %arg1: i32) -> (i32, i32) {
    %c0_i32 = arith.constant 0 : i32
    %c0_i32_0 = arith.constant 0 : i32
    %c0_i32_1 = arith.constant 0 : i32
    return %c0_i32, %c0_i32_0 : i32, i32
  }
  func.func @transform_6(%arg0: i32, %arg1: i32) -> (i32, i32) {
    %c0_i32 = arith.constant 0 : i32
    %c0_i32_0 = arith.constant 0 : i32
    return %arg0, %c0_i32 : i32, i32
  }
}

</mosaic_0001>

<llo_original>
// kernel: tpu_custom_call.1
$region0: #{tpu_custom_call.1}
  #allocation0 [shape = 'u32[]', space=smem, size = 0x4, offset = 0x4, fixed_abs, tag = 'smem constant byte address 0x4 - core index']
  #allocation1 [shape = 'u32[144,128]{1,0:T(1,128)}', space=vmem, size = 0x12000, scoped, tag = 'internal scratch']
  #allocation2 [shape = 'f32[256,128]{1,0:T(8,128)}', space=vmem, size = 0x20000, scoped, tag = 'scratch operand']
  %s0 = inlined_call_operand.hbm [shape: bf16[512,512], index: 0, kind: input, shape index: {}]
  %s1 = inlined_call_operand.hbm [shape: bf16[512,128], index: 1, kind: input, shape index: {}]
  %s2 = inlined_call_operand.hbm [shape: bf16[128,256], index: 2, kind: input, shape index: {}]
  %s3 = inlined_call_operand.vmem [shape: f32[1,256], index: 3, kind: input, shape index: {}]
  %s4 = inlined_call_operand.hbm [shape: bf16[256,128], index: 4, kind: input, shape index: {}]
  %s5 = inlined_call_operand.vmem [shape: f32[1,128], index: 5, kind: input, shape index: {}]
  %s6 = inlined_call_operand.hbm [shape: f32[512,128], index: 6, kind: output, shape index: {}]
  %s7 = sld [smem:[#allocation0]]
  $region81: #{tpu_custom_call.1} parent=0
    _
  %s9 = ssub.s32 1, %s7
  %s10 = scalar_select 0, %s9, %s7
  $region1: #{tpu_custom_call.1} parent=0
    #allocation3 [shape = 'u8[262144]{0}', space=vmem, size = 0x40000, scoped, tag = 'input window, operand 0']
    #allocation4 [shape = 's32[2]{0}', space=sflag, size = 0x8, scoped, tag = 'scoped memory for tpu_custom_call.1']
    #allocation5 [shape = 's32[2]{0}', space=sflag, size = 0x8, scoped, tag = 'scoped memory for tpu_custom_call.1']
    #allocation6 [shape = 'u8[131072]{0}', space=vmem, size = 0x20000, scoped, tag = 'input window, operand 1']
    #allocation7 [shape = 's32[2]{0}', space=sflag, size = 0x8, scoped, tag = 'scoped memory for tpu_custom_call.1']
    #allocation8 [shape = 'u8[65536]{0}', space=vmem, size = 0x10000, scoped, tag = 'input window, operand 2, single buffered']
    #allocation9 [shape = 'u8[65536]{0}', space=vmem, size = 0x10000, scoped, tag = 'input window, operand 4, single buffered']
    #allocation10 [shape = 's32[1]{0}', space=sflag, size = 0x4, scoped, tag = 'scoped memory for tpu_custom_call.1']
    #allocation11 [shape = 'u8[262144]{0}', space=vmem, size = 0x40000, scoped, tag = 'output window, operand 0']
    %11 = vsyncpa [#allocation4], 0
    %s12 = scalar_lea.sflag [#allocation4], 1
    %13 = vsyncpa %s12, 0
    %14 = vsyncpa [#allocation7], 0
    %s15 = scalar_lea.sflag [#allocation7], 1
    %16 = vsyncpa %s15, 0
    %17 = vsyncpa [#allocation10], 0
    %18 = vsyncpa [#allocation5], 0
    %s19 = scalar_lea.sflag [#allocation5], 1
    %20 = vsyncpa %s19, 0
    loop: start=0, step=1, limit=6
    $region2: #{tpu_custom_call.1} parent=1 // loop_pre_header
      _
    $region3: #{tpu_custom_call.1} parent=1 // loop_header
      %s22 = sphi 0, %s26
      %p23 = scmp.ge.s32.totalorder %s22, 6
      %s29 = sphi 0, %s41
      %s30 = sphi 0, %s37
      %s31 = sphi 0, %s29
      %s32 = sphi 0, %s30
      %s33 = sphi 0, %s31
      %s34 = sphi 0, %s32
      %s46 = sphi 0, %s48
      %s49 = sphi 0, %s46
      %s50 = sphi 0, %s49
      %s66 = sphi 0, %s50
      %s72 = sphi 0, %s74
      %s75 = sphi 0, %s72
      %s76 = sphi 0, %s75
      %s92 = sphi 0, %s76
      %s96 = sphi 0, %s96
      %s98 = sphi 0, %s96
      %s99 = sphi 0, %s98
      %s113 = sphi 0, %s99
      %s117 = sphi 0, %s117
      %s119 = sphi 0, %s117
      %s120 = sphi 0, %s119
      %s134 = sphi 0, %s120
      %s138 = sphi 0, %s138
      %s140 = sphi 0, %s138
      %s141 = sphi 0, %s140
      %s155 = sphi 0, %s141
      %s159 = sphi 0, %s159
      %s161 = sphi 0, %s159
      %s162 = sphi 0, %s161
      %s176 = sphi 0, %s162
      %s182 = sphi 0, %s184
      %s185 = sphi 0, %s182
      %s186 = sphi 0, %s185
      %s202 = sphi 0, %s186
    $region4: #{tpu_custom_call.1} parent=1 // loop_header_branch
      %25 = sbr.rel (%p23) target = $region8
    $region5: #{tpu_custom_call.1} parent=1 // loop_body
      %s27 = ssub.s32 %s22, 1
      %s28 = ssub.s32 %s22, 2
      %s35 = sadd.s32 1, %s30
      %p36 = scmp.ge.s32.totalorder %s35, 2
      %s37 = scalar_select %p36, 0, %s35
      %s38 = sadd.s32 1, %s29
      %s39 = scalar_select %p36, %s38, %s29
      %p40 = scmp.ge.s32.totalorder %s39, 2
      %s41 = scalar_select %p40, 0, %s39
      %s42 = ssub.s32 %s29, %s41
      %s43 = ssub.s32 %s30, %s37
      %s44 = sor.u32 %s42, %s43
      %p45 = scmp.eq.s32.totalorder %s44, 0
      %s47 = sadd.s32 %s46, 1
      %s48 = scalar_select %p45, %s46, %s47
      %p51 = pneg %p45
      %p52 = scmp.eq.s32.totalorder %s22, 3
      %p53 = por %p51, %p52
      %p54 = scmp.ne.s32.totalorder %s46, %s49
      %p55 = scmp.eq.s32.totalorder %s22, 0
      %p56 = por %p54, %p55
      %p57 = scmp.ne.s32.totalorder %s46, %s49
      %p58 = scmp.eq.s32.totalorder %s27, 3
      %p59 = por %p57, %p58
      %p60 = scmp.ne.s32.totalorder %s49, %s50
      %p61 = scmp.eq.s32.totalorder %s27, 0
      %p62 = por %p60, %p61
      %p63 = scmp.ne.s32.totalorder %s49, %s50
      %p64 = scmp.eq.s32.totalorder %s28, 3
      %p65 = por %p63, %p64
      %p67 = scmp.ne.s32.totalorder %s50, %s66
      %p68 = scmp.eq.s32.totalorder %s28, 0
      %p69 = por %p67, %p68
      %s70 = ssub.s32 %s30, %s37
      %p71 = scmp.eq.s32.totalorder %s70, 0
      %s73 = sadd.s32 %s72, 1
      %s74 = scalar_select %p71, %s72, %s73
      %p77 = pneg %p71
      %p78 = scmp.eq.s32.totalorder %s22, 3
      %p79 = por %p77, %p78
      %p80 = scmp.ne.s32.totalorder %s72, %s75
      %p81 = scmp.eq.s32.totalorder %s22, 0
      %p82 = por %p80, %p81
      %p83 = scmp.ne.s32.totalorder %s72, %s75
      %p84 = scmp.eq.s32.totalorder %s27, 3
      %p85 = por %p83, %p84
      %p86 = scmp.ne.s32.totalorder %s75, %s76
      %p87 = scmp.eq.s32.totalorder %s27, 0
      %p88 = por %p86, %p87
      %p89 = scmp.ne.s32.totalorder %s75, %s76
      %p90 = scmp.eq.s32.totalorder %s28, 3
      %p91 = por %p89, %p90
      %p93 = scmp.ne.s32.totalorder %s76, %s92
      %p94 = scmp.eq.s32.totalorder %s28, 0
      %p95 = por %p93, %p94
      %s97 = sadd.s32 %s96, 1
      %p100 = scmp.eq.s32.totalorder %s22, 3
      %p101 = scmp.ne.s32.totalorder %s96, %s98
      %p102 = scmp.eq.s32.totalorder %s22, 0
      %p103 = por %p101, %p102
      %p104 = scmp.ne.s32.totalorder %s96, %s98
      %p105 = scmp.eq.s32.totalorder %s27, 3
      %p106 = por %p104, %p105
      %p107 = scmp.ne.s32.totalorder %s98, %s99
      %p108 = scmp.eq.s32.totalorder %s27, 0
      %p109 = por %p107, %p108
      %p110 = scmp.ne.s32.totalorder %s98, %s99
      %p111 = scmp.eq.s32.totalorder %s28, 3
      %p112 = por %p110, %p111
      %p114 = scmp.ne.s32.totalorder %s99, %s113
      %p115 = scmp.eq.s32.totalorder %s28, 0
      %p116 = por %p114, %p115
      %s118 = sadd.s32 %s117, 1
      %p121 = scmp.eq.s32.totalorder %s22, 3
      %p122 = scmp.ne.s32.totalorder %s117, %s119
      %p123 = scmp.eq.s32.totalorder %s22, 0
      %p124 = por %p122, %p123
      %p125 = scmp.ne.s32.totalorder %s117, %s119
      %p126 = scmp.eq.s32.totalorder %s27, 3
      %p127 = por %p125, %p126
      %p128 = scmp.ne.s32.totalorder %s119, %s120
      %p129 = scmp.eq.s32.totalorder %s27, 0
      %p130 = por %p128, %p129
      %p131 = scmp.ne.s32.totalorder %s119, %s120
      %p132 = scmp.eq.s32.totalorder %s28, 3
      %p133 = por %p131, %p132
      %p135 = scmp.ne.s32.totalorder %s120, %s134
      %p136 = scmp.eq.s32.totalorder %s28, 0
      %p137 = por %p135, %p136
      %s139 = sadd.s32 %s138, 1
      %p142 = scmp.eq.s32.totalorder %s22, 3
      %p143 = scmp.ne.s32.totalorder %s138, %s140
      %p144 = scmp.eq.s32.totalorder %s22, 0
      %p145 = por %p143, %p144
      %p146 = scmp.ne.s32.totalorder %s138, %s140
      %p147 = scmp.eq.s32.totalorder %s27, 3
      %p148 = por %p146, %p147
      %p149 = scmp.ne.s32.totalorder %s140, %s141
      %p150 = scmp.eq.s32.totalorder %s27, 0
      %p151 = por %p149, %p150
      %p152 = scmp.ne.s32.totalorder %s140, %s141
      %p153 = scmp.eq.s32.totalorder %s28, 3
      %p154 = por %p152, %p153
      %p156 = scmp.ne.s32.totalorder %s141, %s155
      %p157 = scmp.eq.s32.totalorder %s28, 0
      %p158 = por %p156, %p157
      %s160 = sadd.s32 %s159, 1
      %p163 = scmp.eq.s32.totalorder %s22, 3
      %p164 = scmp.ne.s32.totalorder %s159, %s161
      %p165 = scmp.eq.s32.totalorder %s22, 0
      %p166 = por %p164, %p165
      %p167 = scmp.ne.s32.totalorder %s159, %s161
      %p168 = scmp.eq.s32.totalorder %s27, 3
      %p169 = por %p167, %p168
      %p170 = scmp.ne.s32.totalorder %s161, %s162
      %p171 = scmp.eq.s32.totalorder %s27, 0
      %p172 = por %p170, %p171
      %p173 = scmp.ne.s32.totalorder %s161, %s162
      %p174 = scmp.eq.s32.totalorder %s28, 3
      %p175 = por %p173, %p174
      %p177 = scmp.ne.s32.totalorder %s162, %s176
      %p178 = scmp.eq.s32.totalorder %s28, 0
      %p179 = por %p177, %p178
      %s180 = ssub.s32 %s29, %s41
      %p181 = scmp.eq.s32.totalorder %s180, 0
      %s183 = sadd.s32 %s182, 1
      %s184 = scalar_select %p181, %s182, %s183
      %p187 = pneg %p181
      %p188 = scmp.eq.s32.totalorder %s22, 3
      %p189 = por %p187, %p188
      %p190 = scmp.ne.s32.totalorder %s182, %s185
      %p191 = scmp.eq.s32.totalorder %s22, 0
      %p192 = por %p190, %p191
      %p193 = scmp.ne.s32.totalorder %s182, %s185
      %p194 = scmp.eq.s32.totalorder %s27, 3
      %p195 = por %p193, %p194
      %p196 = scmp.ne.s32.totalorder %s185, %s186
      %p197 = scmp.eq.s32.totalorder %s27, 0
      %p198 = por %p196, %p197
      %p199 = scmp.ne.s32.totalorder %s185, %s186
      %p200 = scmp.eq.s32.totalorder %s28, 3
      %p201 = por %p199, %p200
      %p203 = scmp.ne.s32.totalorder %s186, %s202
      %p204 = scmp.eq.s32.totalorder %s28, 0
      %p205 = por %p203, %p204
      %p206 = scmp.le.s32.totalorder 1, %s22
      %p207 = scmp.lt.s32.totalorder %s22, 5
      %p208 = pnand %p206, %p207
      %p209 = pneg %p208
      // Predicated region
      $region9: #{tpu_custom_call.1} parent=5 // pred_check
        _
      $region10: #{tpu_custom_call.1} parent=5 // pred_check_branch
        %211 = sbr.rel (%p208) target = $region12
      $region11: #{tpu_custom_call.1} parent=5 // pred_region
        %s212 = ssub.s32 %s22, 1
        // Predicated region
        $region13: #{tpu_custom_call.1} parent=11 // pred_check
          %p213 = pneg %p109
        $region14: #{tpu_custom_call.1} parent=11 // pred_check_branch
          %215 = sbr.rel (%p213) target = $region16
        $region15: #{tpu_custom_call.1} parent=11 // pred_region
          %s217 = ssub.s32 2048, 2048
          %218 = vsyncadd [#allocation7], %s217
          %s219 = sshll.u32 [#allocation8], 4
          %s220 = int_to_ptr.vmem [resolvable:$true] %s219
          %225 = dma.hbm_to_vmem [thread:$0]  %s2, 2048, %s220, [#allocation7], 128, 128, 8
        $region16: #{tpu_custom_call.1} parent=11 // pred_fallthru
          _
        // Predicated region
        $region17: #{tpu_custom_call.1} parent=11 // pred_check
          %p226 = pneg %p130
        $region18: #{tpu_custom_call.1} parent=11 // pred_check_branch
          %228 = sbr.rel (%p226) target = $region20
        $region19: #{tpu_custom_call.1} parent=11 // pred_region
          _
        $region20: #{tpu_custom_call.1} parent=11 // pred_fallthru
          _
        // Predicated region
        $region21: #{tpu_custom_call.1} parent=11 // pred_check
          %p229 = pneg %p151
        $region22: #{tpu_custom_call.1} parent=11 // pred_check_branch
          %231 = sbr.rel (%p229) target = $region24
        $region23: #{tpu_custom_call.1} parent=11 // pred_region
          %s233 = ssub.s32 2048, 2048
          %234 = vsyncadd [#allocation10], %s233
          %s235 = sshll.u32 [#allocation9], 4
          %s236 = int_to_ptr.vmem [resolvable:$true] %s235
          %241 = dma.hbm_to_vmem [thread:$0]  %s4, 2048, %s236, [#allocation10], 64, 64, 4
        $region24: #{tpu_custom_call.1} parent=11 // pred_fallthru
          _
        // Predicated region
        $region25: #{tpu_custom_call.1} parent=11 // pred_check
          %p242 = pneg %p172
        $region26: #{tpu_custom_call.1} parent=11 // pred_check_branch
          %244 = sbr.rel (%p242) target = $region28
        $region27: #{tpu_custom_call.1} parent=11 // pred_region
          _
        $region28: #{tpu_custom_call.1} parent=11 // pred_fallthru
          _
      $region12: #{tpu_custom_call.1} parent=5 // pred_fallthru
        _
      %p245 = scmp.lt.s32.totalorder %s22, 4
      // Predicated region
      $region29: #{tpu_custom_call.1} parent=5 // pred_check
        %p246 = pneg %p245
      $region30: #{tpu_custom_call.1} parent=5 // pred_check_branch
        %248 = sbr.rel (%p246) target = $region32
      $region31: #{tpu_custom_call.1} parent=5 // pred_region
        // Predicated region
        $region33: #{tpu_custom_call.1} parent=31 // pred_check
          %p249 = pneg %p56
        $region34: #{tpu_custom_call.1} parent=31 // pred_check_branch
          %251 = sbr.rel (%p249) target = $region36
        $region35: #{tpu_custom_call.1} parent=31 // pred_region
          %s252 = sand.u32 %s46, 1
          %s253 = scalar_lea.sflag [#allocation4], %s252
          %s254 = sand.u32 %s46, 1
          %s255 = smul.addr %s254, 256
          %s256 = scalar_lea.vmem [#allocation3], %s255
          %s257 = smul.u32 32, %s29
          %s258 = smul.u32 2, %s30
          %s260 = ssub.s32 4096, 4096
          %261 = vsyncadd %s253, %s260
          %s262 = smul.addr %s257, 4
          %s263 = sadd.s32 %s258, %s262
          %s264 = smul.addr %s263, 64
          %s265 = scalar_lea.hbm %s0, %s264
          %s266 = sshll.u32 %s256, 4
          %s267 = int_to_ptr.vmem [resolvable:$true] %s266
          %272 = dma.hbm_to_vmem [thread:$0]  %s265, 4096, %s267, %s253, 256, 128, 8
        $region36: #{tpu_custom_call.1} parent=31 // pred_fallthru
          _
        // Predicated region
        $region37: #{tpu_custom_call.1} parent=31 // pred_check
          %p273 = pneg %p82
        $region38: #{tpu_custom_call.1} parent=31 // pred_check_branch
          %275 = sbr.rel (%p273) target = $region40
        $region39: #{tpu_custom_call.1} parent=31 // pred_region
          %s276 = sand.u32 %s22, 1
          %s277 = scalar_lea.sflag [#allocation7], %s276
          %s278 = sand.u32 %s72, 1
          %s279 = smul.addr %s278, 128
          %s280 = scalar_lea.vmem [#allocation6], %s279
          %s281 = smul.u32 32, %s30
          %s283 = ssub.s32 2048, 2048
          %284 = vsyncadd %s277, %s283
          %s285 = smul.addr %s281, 64
          %s286 = scalar_lea.hbm %s1, %s285
          %s287 = sshll.u32 %s280, 4
          %s288 = int_to_ptr.vmem [resolvable:$true] %s287
          %293 = dma.hbm_to_vmem [thread:$0]  %s286, 2048, %s288, %s277, 64, 64, 4
        $region40: #{tpu_custom_call.1} parent=31 // pred_fallthru
          _
      $region32: #{tpu_custom_call.1} parent=5 // pred_fallthru
        _
      %p294 = scmp.le.s32.totalorder 1, %s22
      %p295 = scmp.lt.s32.totalorder %s22, 5
      %p296 = pnand %p294, %p295
      %p297 = pneg %p296
      // Predicated region
      $region41: #{tpu_custom_call.1} parent=5 // pred_check
        _
      $region42: #{tpu_custom_call.1} parent=5 // pred_check_branch
        %299 = sbr.rel (%p296) target = $region44
      $region43: #{tpu_custom_call.1} parent=5 // pred_region
        %s300 = ssub.s32 %s22, 1
        %s301 = sand.u32 %s49, 1
        %s302 = scalar_lea.sflag [#allocation4], %s301
        %s303 = sand.u32 %s49, 1
        %s304 = smul.addr %s303, 256
        %s305 = scalar_lea.vmem [#allocation3], %s304
        // Predicated region
        $region45: #{tpu_custom_call.1} parent=43 // pred_check
          %p306 = pneg %p62
        $region46: #{tpu_custom_call.1} parent=43 // pred_check_branch
          %308 = sbr.rel (%p306) target = $region48
        $region47: #{tpu_custom_call.1} parent=43 // pred_region
          %309 = dma.done %s302, 4096
        $region48: #{tpu_custom_call.1} parent=43 // pred_fallthru
          _
        %s310 = sand.u32 %s27, 1
        %s311 = scalar_lea.sflag [#allocation7], %s310
        %s312 = sand.u32 %s75, 1
        %s313 = smul.addr %s312, 128
        %s314 = scalar_lea.vmem [#allocation6], %s313
        // Predicated region
        $region49: #{tpu_custom_call.1} parent=43 // pred_check
          %p315 = pneg %p88
        $region50: #{tpu_custom_call.1} parent=43 // pred_check_branch
          %317 = sbr.rel (%p315) target = $region52
        $region51: #{tpu_custom_call.1} parent=43 // pred_region
          %318 = dma.done %s311, 2048
        $region52: #{tpu_custom_call.1} parent=43 // pred_fallthru
          _
        // Predicated region
        $region53: #{tpu_custom_call.1} parent=43 // pred_check
          %p319 = pneg %p109
        $region54: #{tpu_custom_call.1} parent=43 // pred_check_branch
          %321 = sbr.rel (%p319) target = $region56
        $region55: #{tpu_custom_call.1} parent=43 // pred_region
          %322 = dma.done [#allocation7], 2048
        $region56: #{tpu_custom_call.1} parent=43 // pred_fallthru
          _
        // Predicated region
        $region57: #{tpu_custom_call.1} parent=43 // pred_check
          %p323 = pneg %p151
        $region58: #{tpu_custom_call.1} parent=43 // pred_check_branch
          %325 = sbr.rel (%p323) target = $region60
        $region59: #{tpu_custom_call.1} parent=43 // pred_region
          %326 = dma.done [#allocation10], 2048
        $region60: #{tpu_custom_call.1} parent=43 // pred_fallthru
          _
        %s327 = sand.u32 %s49, 1
        %s328 = scalar_lea.sflag [#allocation4], %s327
        %s329 = sand.u32 %s49, 1
        %s330 = smul.addr %s329, 256
        %s331 = scalar_lea.vmem [#allocation3], %s330
        %p332 = pneg %p62
        %p333 = pneg %p59
        %s334 = sand.u32 %s27, 1
        %s335 = scalar_lea.sflag [#allocation7], %s334
        %s336 = sand.u32 %s75, 1
        %s337 = smul.addr %s336, 128
        %s338 = scalar_lea.vmem [#allocation6], %s337
        %p339 = pneg %p88
        %p340 = pneg %p85
        %p341 = pneg %p109
        %p342 = pneg %p106
        %p343 = pneg %p130
        %p344 = pneg %p127
        %p345 = pneg %p151
        %p346 = pneg %p148
        %p347 = pneg %p172
        %p348 = pneg %p169
        %p349 = pneg %p198
        %p350 = pneg %p195
        %s351 = sand.u32 %s185, 1
        %s352 = scalar_lea.sflag [#allocation5], %s351
        %s353 = sand.u32 %s185, 1
        %s354 = smul.addr %s353, 256
        %s355 = scalar_lea.vmem [#allocation11], %s354
        %s356 = smul.u32 32, %s31
        %s357 = smul.u32 2, %s32
        %s358 = smul.u32 32, %s32
        %s359 = smul.u32 32, %s31
        %p361 = scmp.eq.s32.totalorder %s32, 0
        // Predicated region
        $region61: #{tpu_custom_call.1} parent=43 // pred_check
          %p362 = pneg %p361
        $region62: #{tpu_custom_call.1} parent=43 // pred_check_branch
          %364 = sbr.rel (%p362) target = $region64
        $region63: #{tpu_custom_call.1} parent=43 // pred_region
          %365 = vst [vmem:[#allocation2] sm:$0xff] 0.0
          %366 = vst [vmem:[#allocation2 + $0x8] sm:$0xff] 0.0
          %367 = vst [vmem:[#allocation2 + $0x10] sm:$0xff] 0.0
          %368 = vst [vmem:[#allocation2 + $0x18] sm:$0xff] 0.0
          %369 = vst [vmem:[#allocation2 + $0x20] sm:$0xff] 0.0
          %370 = vst [vmem:[#allocation2 + $0x28] sm:$0xff] 0.0
          %371 = vst [vmem:[#allocation2 + $0x30] sm:$0xff] 0.0
          %372 = vst [vmem:[#allocation2 + $0x38] sm:$0xff] 0.0
          %373 = vst [vmem:[#allocation2 + $0x40] sm:$0xff] 0.0
          %374 = vst [vmem:[#allocation2 + $0x48] sm:$0xff] 0.0
          %375 = vst [vmem:[#allocation2 + $0x50] sm:$0xff] 0.0
          %376 = vst [vmem:[#allocation2 + $0x58] sm:$0xff] 0.0
          %377 = vst [vmem:[#allocation2 + $0x60] sm:$0xff] 0.0
          %378 = vst [vmem:[#allocation2 + $0x68] sm:$0xff] 0.0
          %379 = vst [vmem:[#allocation2 + $0x70] sm:$0xff] 0.0
          %380 = vst [vmem:[#allocation2 + $0x78] sm:$0xff] 0.0
          %381 = vst [vmem:[#allocation2 + $0x80] sm:$0xff] 0.0
          %382 = vst [vmem:[#allocation2 + $0x88] sm:$0xff] 0.0
          %383 = vst [vmem:[#allocation2 + $0x90] sm:$0xff] 0.0
          %384 = vst [vmem:[#allocation2 + $0x98] sm:$0xff] 0.0
          %385 = vst [vmem:[#allocation2 + $0xa0] sm:$0xff] 0.0
          %386 = vst [vmem:[#allocation2 + $0xa8] sm:$0xff] 0.0
          %387 = vst [vmem:[#allocation2 + $0xb0] sm:$0xff] 0.0
          %388 = vst [vmem:[#allocation2 + $0xb8] sm:$0xff] 0.0
          %389 = vst [vmem:[#allocation2 + $0xc0] sm:$0xff] 0.0
          %390 = vst [vmem:[#allocation2 + $0xc8] sm:$0xff] 0.0
          %391 = vst [vmem:[#allocation2 + $0xd0] sm:$0xff] 0.0
          %392 = vst [vmem:[#allocation2 + $0xd8] sm:$0xff] 0.0
          %393 = vst [vmem:[#allocation2 + $0xe0] sm:$0xff] 0.0
          %394 = vst [vmem:[#allocation2 + $0xe8] sm:$0xff] 0.0
          %395 = vst [vmem:[#allocation2 + $0xf0] sm:$0xff] 0.0
          %396 = vst [vmem:[#allocation2 + $0xf8] sm:$0xff] 0.0
        $region64: #{tpu_custom_call.1} parent=43 // pred_fallthru
          _
        %v397 = vld [vmem:[#allocation2] sm:$0xff]
        %v398 = vld [vmem:[#allocation2 + $0x8] sm:$0xff]
        %v399 = vld [vmem:[#allocation2 + $0x10] sm:$0xff]
        %v400 = vld [vmem:[#allocation2 + $0x18] sm:$0xff]
        %v401 = vld [vmem:[#allocation2 + $0x20] sm:$0xff]
        %v402 = vld [vmem:[#allocation2 + $0x28] sm:$0xff]
        %v403 = vld [vmem:[#allocation2 + $0x30] sm:$0xff]
        %v404 = vld [vmem:[#allocation2 + $0x38] sm:$0xff]
        %v405 = vld [vmem:[#allocation2 + $0x40] sm:$0xff]
        %v406 = vld [vmem:[#allocation2 + $0x48] sm:$0xff]
        %v407 = vld [vmem:[#allocation2 + $0x50] sm:$0xff]
        %v408 = vld [vmem:[#allocation2 + $0x58] sm:$0xff]
        %v409 = vld [vmem:[#allocation2 + $0x60] sm:$0xff]
        %v410 = vld [vmem:[#allocation2 + $0x68] sm:$0xff]
        %v411 = vld [vmem:[#allocation2 + $0x70] sm:$0xff]
        %v412 = vld [vmem:[#allocation2 + $0x78] sm:$0xff]
        %v413 = vld [vmem:[#allocation2 + $0x80] sm:$0xff]
        %v414 = vld [vmem:[#allocation2 + $0x88] sm:$0xff]
        %v415 = vld [vmem:[#allocation2 + $0x90] sm:$0xff]
        %v416 = vld [vmem:[#allocation2 + $0x98] sm:$0xff]
        %v417 = vld [vmem:[#allocation2 + $0xa0] sm:$0xff]
        %v418 = vld [vmem:[#allocation2 + $0xa8] sm:$0xff]
        %v419 = vld [vmem:[#allocation2 + $0xb0] sm:$0xff]
        %v420 = vld [vmem:[#allocation2 + $0xb8] sm:$0xff]
        %v421 = vld [vmem:[#allocation2 + $0xc0] sm:$0xff]
        %v422 = vld [vmem:[#allocation2 + $0xc8] sm:$0xff]
        %v423 = vld [vmem:[#allocation2 + $0xd0] sm:$0xff]
        %v424 = vld [vmem:[#allocation2 + $0xd8] sm:$0xff]
        %v425 = vld [vmem:[#allocation2 + $0xe0] sm:$0xff]
        %v426 = vld [vmem:[#allocation2 + $0xe8] sm:$0xff]
        %v427 = vld [vmem:[#allocation2 + $0xf0] sm:$0xff]
        %v428 = vld [vmem:[#allocation2 + $0xf8] sm:$0xff]
        %v429 = vld [vmem:[%s305] sm:$0xff]
        %v430 = vld [vmem:[%s305 + $0x8] sm:$0xff]
        %v431 = vld [vmem:[%s305 + $0x10] sm:$0xff]
        %v432 = vld [vmem:[%s305 + $0x18] sm:$0xff]
        %v433 = vld [vmem:[%s305 + $0x20] sm:$0xff]
        %v434 = vld [vmem:[%s305 + $0x28] sm:$0xff]
        %v435 = vld [vmem:[%s305 + $0x30] sm:$0xff]
        %v436 = vld [vmem:[%s305 + $0x38] sm:$0xff]
        %v437 = vld [vmem:[%s305 + $0x40] sm:$0xff]
        %v438 = vld [vmem:[%s305 + $0x48] sm:$0xff]
        %v439 = vld [vmem:[%s305 + $0x50] sm:$0xff]
        %v440 = vld [vmem:[%s305 + $0x58] sm:$0xff]
        %v441 = vld [vmem:[%s305 + $0x60] sm:$0xff]
        %v442 = vld [vmem:[%s305 + $0x68] sm:$0xff]
        %v443 = vld [vmem:[%s305 + $0x70] sm:$0xff]
        %v444 = vld [vmem:[%s305 + $0x78] sm:$0xff]
        %v445 = vld [vmem:[%s305 + $0x80] sm:$0xff]
        %v446 = vld [vmem:[%s305 + $0x88] sm:$0xff]
        %v447 = vld [vmem:[%s305 + $0x90] sm:$0xff]
        %v448 = vld [vmem:[%s305 + $0x98] sm:$0xff]
        %v449 = vld [vmem:[%s305 + $0xa0] sm:$0xff]
        %v450 = vld [vmem:[%s305 + $0xa8] sm:$0xff]
        %v451 = vld [vmem:[%s305 + $0xb0] sm:$0xff]
        %v452 = vld [vmem:[%s305 + $0xb8] sm:$0xff]
        %v453 = vld [vmem:[%s305 + $0xc0] sm:$0xff]
        %v454 = vld [vmem:[%s305 + $0xc8] sm:$0xff]
        %v455 = vld [vmem:[%s305 + $0xd0] sm:$0xff]
        %v456 = vld [vmem:[%s305 + $0xd8] sm:$0xff]
        %v457 = vld [vmem:[%s305 + $0xe0] sm:$0xff]
        %v458 = vld [vmem:[%s305 + $0xe8] sm:$0xff]
        %v459 = vld [vmem:[%s305 + $0xf0] sm:$0xff]
        %v460 = vld [vmem:[%s305 + $0xf8] sm:$0xff]
        %v461 = vld [vmem:[%s314] sm:$0xf]
        %v462 = vld [vmem:[%s314 + $0x4] sm:$0xf]
        %v463 = vld [vmem:[%s314 + $0x8] sm:$0xf]
        %v464 = vld [vmem:[%s314 + $0xc] sm:$0xf]
        %v465 = vld [vmem:[%s314 + $0x10] sm:$0xf]
        %v466 = vld [vmem:[%s314 + $0x14] sm:$0xf]
        %v467 = vld [vmem:[%s314 + $0x18] sm:$0xf]
        %v468 = vld [vmem:[%s314 + $0x1c] sm:$0xf]
        %v469 = vld [vmem:[%s314 + $0x20] sm:$0xf]
        %v470 = vld [vmem:[%s314 + $0x24] sm:$0xf]
        %v471 = vld [vmem:[%s314 + $0x28] sm:$0xf]
        %v472 = vld [vmem:[%s314 + $0x2c] sm:$0xf]
        %v473 = vld [vmem:[%s314 + $0x30] sm:$0xf]
        %v474 = vld [vmem:[%s314 + $0x34] sm:$0xf]
        %v475 = vld [vmem:[%s314 + $0x38] sm:$0xf]
        %v476 = vld [vmem:[%s314 + $0x3c] sm:$0xf]
        %v477 = vld [vmem:[%s314 + $0x40] sm:$0xf]
        %v478 = vld [vmem:[%s314 + $0x44] sm:$0xf]
        %v479 = vld [vmem:[%s314 + $0x48] sm:$0xf]
        %v480 = vld [vmem:[%s314 + $0x4c] sm:$0xf]
        %v481 = vld [vmem:[%s314 + $0x50] sm:$0xf]
        %v482 = vld [vmem:[%s314 + $0x54] sm:$0xf]
        %v483 = vld [vmem:[%s314 + $0x58] sm:$0xf]
        %v484 = vld [vmem:[%s314 + $0x5c] sm:$0xf]
        %v485 = vld [vmem:[%s314 + $0x60] sm:$0xf]
        %v486 = vld [vmem:[%s314 + $0x64] sm:$0xf]
        %v487 = vld [vmem:[%s314 + $0x68] sm:$0xf]
        %v488 = vld [vmem:[%s314 + $0x6c] sm:$0xf]
        %v489 = vld [vmem:[%s314 + $0x70] sm:$0xf]
        %v490 = vld [vmem:[%s314 + $0x74] sm:$0xf]
        %v491 = vld [vmem:[%s314 + $0x78] sm:$0xf]
        %v492 = vld [vmem:[%s314 + $0x7c] sm:$0xf]
        %v525 = vunpack.c.l.b16 %v429
        %v526 = vunpack.c.h.b16 %v429
        %v527 = vunpack.c.l.b16 %v430
        %v528 = vunpack.c.h.b16 %v430
        %v529 = vunpack.c.l.b16 %v431
        %v530 = vunpack.c.h.b16 %v431
        %v531 = vunpack.c.l.b16 %v432
        %v532 = vunpack.c.h.b16 %v432
        %v533 = vunpack.c.l.b16 %v433
        %v534 = vunpack.c.h.b16 %v433
        %v535 = vunpack.c.l.b16 %v434
        %v536 = vunpack.c.h.b16 %v434
        %v537 = vunpack.c.l.b16 %v435
        %v538 = vunpack.c.h.b16 %v435
        %v539 = vunpack.c.l.b16 %v436
        %v540 = vunpack.c.h.b16 %v436
        %v541 = vunpack.c.l.b16 %v437
        %v542 = vunpack.c.h.b16 %v437
        %v543 = vunpack.c.l.b16 %v438
        %v544 = vunpack.c.h.b16 %v438
        %v545 = vunpack.c.l.b16 %v439
        %v546 = vunpack.c.h.b16 %v439
        %v547 = vunpack.c.l.b16 %v440
        %v548 = vunpack.c.h.b16 %v440
        %v549 = vunpack.c.l.b16 %v441
        %v550 = vunpack.c.h.b16 %v441
        %v551 = vunpack.c.l.b16 %v442
        %v552 = vunpack.c.h.b16 %v442
        %v553 = vunpack.c.l.b16 %v443
        %v554 = vunpack.c.h.b16 %v443
        %v555 = vunpack.c.l.b16 %v444
        %v556 = vunpack.c.h.b16 %v444
        %v557 = vunpack.c.l.b16 %v445
        %v558 = vunpack.c.h.b16 %v445
        %v559 = vunpack.c.l.b16 %v446
        %v560 = vunpack.c.h.b16 %v446
        %v561 = vunpack.c.l.b16 %v447
        %v562 = vunpack.c.h.b16 %v447
        %v563 = vunpack.c.l.b16 %v448
        %v564 = vunpack.c.h.b16 %v448
        %v565 = vunpack.c.l.b16 %v449
        %v566 = vunpack.c.h.b16 %v449
        %v567 = vunpack.c.l.b16 %v450
        %v568 = vunpack.c.h.b16 %v450
        %v569 = vunpack.c.l.b16 %v451
        %v570 = vunpack.c.h.b16 %v451
        %v571 = vunpack.c.l.b16 %v452
        %v572 = vunpack.c.h.b16 %v452
        %v573 = vunpack.c.l.b16 %v453
        %v574 = vunpack.c.h.b16 %v453
        %v575 = vunpack.c.l.b16 %v454
        %v576 = vunpack.c.h.b16 %v454
        %v577 = vunpack.c.l.b16 %v455
        %v578 = vunpack.c.h.b16 %v455
        %v579 = vunpack.c.l.b16 %v456
        %v580 = vunpack.c.h.b16 %v456
        %v581 = vunpack.c.l.b16 %v457
        %v582 = vunpack.c.h.b16 %v457
        %v583 = vunpack.c.l.b16 %v458
        %v584 = vunpack.c.h.b16 %v458
        %v585 = vunpack.c.l.b16 %v459
        %v586 = vunpack.c.h.b16 %v459
        %v587 = vunpack.c.l.b16 %v460
        %v588 = vunpack.c.h.b16 %v460
        %v589 = vpack.c.b16 %v527, %v525
        %v590 = vpack.c.b16 %v528, %v526
        %v591 = vpack.c.b16 %v531, %v529
        %v592 = vpack.c.b16 %v532, %v530
        %v593 = vpack.c.b16 %v535, %v533
        %v594 = vpack.c.b16 %v536, %v534
        %v595 = vpack.c.b16 %v539, %v537
        %v596 = vpack.c.b16 %v540, %v538
        %v597 = vpack.c.b16 %v543, %v541
        %v598 = vpack.c.b16 %v544, %v542
        %v599 = vpack.c.b16 %v547, %v545
        %v600 = vpack.c.b16 %v548, %v546
        %v601 = vpack.c.b16 %v551, %v549
        %v602 = vpack.c.b16 %v552, %v550
        %v603 = vpack.c.b16 %v555, %v553
        %v604 = vpack.c.b16 %v556, %v554
        %v605 = vpack.c.b16 %v559, %v557
        %v606 = vpack.c.b16 %v560, %v558
        %v607 = vpack.c.b16 %v563, %v561
        %v608 = vpack.c.b16 %v564, %v562
        %v609 = vpack.c.b16 %v567, %v565
        %v610 = vpack.c.b16 %v568, %v566
        %v611 = vpack.c.b16 %v571, %v569
        %v612 = vpack.c.b16 %v572, %v570
        %v613 = vpack.c.b16 %v575, %v573
        %v614 = vpack.c.b16 %v576, %v574
        %v615 = vpack.c.b16 %v579, %v577
        %v616 = vpack.c.b16 %v580, %v578
        %v617 = vpack.c.b16 %v583, %v581
        %v618 = vpack.c.b16 %v584, %v582
        %v619 = vpack.c.b16 %v587, %v585
        %v620 = vpack.c.b16 %v588, %v586
        %v685 = vunpack.c.l.b16 %v461
        %v686 = vunpack.c.l.b16 %v462
        %v687 = vunpack.c.l.b16 %v463
        %v688 = vunpack.c.l.b16 %v464
        %v689 = vunpack.c.l.b16 %v465
        %v690 = vunpack.c.l.b16 %v466
        %v691 = vunpack.c.l.b16 %v467
        %v692 = vunpack.c.l.b16 %v468
        %v693 = vunpack.c.l.b16 %v469
        %v694 = vunpack.c.l.b16 %v470
        %v695 = vunpack.c.l.b16 %v471
        %v696 = vunpack.c.l.b16 %v472
        %v697 = vunpack.c.l.b16 %v473
        %v698 = vunpack.c.l.b16 %v474
        %v699 = vunpack.c.l.b16 %v475
        %v700 = vunpack.c.l.b16 %v476
        %v701 = vunpack.c.l.b16 %v477
        %v702 = vunpack.c.l.b16 %v478
        %v703 = vunpack.c.l.b16 %v479
        %v704 = vunpack.c.l.b16 %v480
        %v705 = vunpack.c.l.b16 %v481
        %v706 = vunpack.c.l.b16 %v482
        %v707 = vunpack.c.l.b16 %v483
        %v708 = vunpack.c.l.b16 %v484
        %v709 = vunpack.c.l.b16 %v485
        %v710 = vunpack.c.l.b16 %v486
        %v711 = vunpack.c.l.b16 %v487
        %v712 = vunpack.c.l.b16 %v488
        %v713 = vunpack.c.l.b16 %v489
        %v714 = vunpack.c.l.b16 %v490
        %v715 = vunpack.c.l.b16 %v491
        %v716 = vunpack.c.l.b16 %v492
        %v717 = vpack.c.b16 %v686, %v685
        %v718 = vpack.c.b16 %v688, %v687
        %v719 = vpack.c.b16 %v690, %v689
        %v720 = vpack.c.b16 %v692, %v691
        %v721 = vpack.c.b16 %v694, %v693
        %v722 = vpack.c.b16 %v696, %v695
        %v723 = vpack.c.b16 %v698, %v697
        %v724 = vpack.c.b16 %v700, %v699
        %v725 = vpack.c.b16 %v702, %v701
        %v726 = vpack.c.b16 %v704, %v703
        %v727 = vpack.c.b16 %v706, %v705
        %v728 = vpack.c.b16 %v708, %v707
        %v729 = vpack.c.b16 %v710, %v709
        %v730 = vpack.c.b16 %v712, %v711
        %v731 = vpack.c.b16 %v714, %v713
        %v732 = vpack.c.b16 %v716, %v715
        %749 = vmatprep.subr.bf16.mxu0 0
        %750 = vmatpush1.bf16.msra.mxu0 %v724
        %751 = vmatprep.subr.bf16.mxu0 0
        %752 = vmatpush1.bf16.msra.mxu0 %v723
        %753 = vmatprep.subr.bf16.mxu0 0
        %754 = vmatpush1.bf16.msra.mxu0 %v722
        %755 = vmatprep.subr.bf16.mxu0 0
        %756 = vmatpush1.bf16.msra.mxu0 %v721
        %757 = vmatprep.subr.bf16.mxu0 0
        %758 = vmatpush1.bf16.msra.mxu0 %v720
        %759 = vmatprep.subr.bf16.mxu0 0
        %760 = vmatpush1.bf16.msra.mxu0 %v719
        %761 = vmatprep.subr.bf16.mxu0 0
        %762 = vmatpush1.bf16.msra.mxu0 %v718
        %763 = vmatprep.subr.bf16.mxu0 0
        %764 = vmatpush1.bf16.msra.mxu0 %v717
        %765 = vmatprep.subr.bf16.mxu0 0
        %766 = vmatpush2.bf16.msra.mxu0 %v732
        %767 = vmatprep.subr.bf16.mxu0 0
        %768 = vmatpush2.bf16.msra.mxu0 %v731
        %769 = vmatprep.subr.bf16.mxu0 0
        %770 = vmatpush2.bf16.msra.mxu0 %v730
        %771 = vmatprep.subr.bf16.mxu0 0
        %772 = vmatpush2.bf16.msra.mxu0 %v729
        %773 = vmatprep.subr.bf16.mxu0 0
        %774 = vmatpush2.bf16.msra.mxu0 %v728
        %775 = vmatprep.subr.bf16.mxu0 0
        %776 = vmatpush2.bf16.msra.mxu0 %v727
        %777 = vmatprep.subr.bf16.mxu0 0
        %778 = vmatpush2.bf16.msra.mxu0 %v726
        %779 = vmatprep.subr.bf16.mxu0 0
        %780 = vmatpush2.bf16.msra.mxu0 %v725
        %781 = vmatprep.mubr.bf16.mxu0 %v590
        %782 = vmatmul.mubr.bf16.gmra.mxu0 %v589
        %v783 = vpop.f32.mrf.mxu0
        %v784 = vadd.f32 0.0, %v783
        %v785 = vpop.f32.mrf.mxu0
        %v786 = vpop.f32.mrf.mxu0
        %v787 = vadd.f32 0.0, %v786
        %v788 = vpop.f32.mrf.mxu0
        %789 = vmatprep.mubr.bf16.mxu0 %v592
        %790 = vmatmul.mubr.bf16.gmra.mxu0 %v591
        %v791 = vpop.f32.mrf.mxu0
        %v792 = vadd.f32 0.0, %v791
        %v793 = vpop.f32.mrf.mxu0
        %v794 = vpop.f32.mrf.mxu0
        %v795 = vadd.f32 0.0, %v794
        %v796 = vpop.f32.mrf.mxu0
        %797 = vmatprep.mubr.bf16.mxu0 %v594
        %798 = vmatmul.mubr.bf16.gmra.mxu0 %v593
        %v799 = vpop.f32.mrf.mxu0
        %v800 = vadd.f32 0.0, %v799
        %v801 = vpop.f32.mrf.mxu0
        %v802 = vpop.f32.mrf.mxu0
        %v803 = vadd.f32 0.0, %v802
        %v804 = vpop.f32.mrf.mxu0
        %805 = vmatprep.mubr.bf16.mxu0 %v596
        %806 = vmatmul.mubr.bf16.gmra.mxu0 %v595
        %v807 = vpop.f32.mrf.mxu0
        %v808 = vadd.f32 0.0, %v807
        %v809 = vpop.f32.mrf.mxu0
        %v810 = vpop.f32.mrf.mxu0
        %v811 = vadd.f32 0.0, %v810
        %v812 = vpop.f32.mrf.mxu0
        %813 = vmatprep.mubr.bf16.mxu0 %v598
        %814 = vmatmul.mubr.bf16.gmra.mxu0 %v597
        %v815 = vpop.f32.mrf.mxu0
        %v816 = vadd.f32 0.0, %v815
        %v817 = vpop.f32.mrf.mxu0
        %v818 = vpop.f32.mrf.mxu0
        %v819 = vadd.f32 0.0, %v818
        %v820 = vpop.f32.mrf.mxu0
        %821 = vmatprep.mubr.bf16.mxu0 %v600
        %822 = vmatmul.mubr.bf16.gmra.mxu0 %v599
        %v823 = vpop.f32.mrf.mxu0
        %v824 = vadd.f32 0.0, %v823
        %v825 = vpop.f32.mrf.mxu0
        %v826 = vpop.f32.mrf.mxu0
        %v827 = vadd.f32 0.0, %v826
        %v828 = vpop.f32.mrf.mxu0
        %829 = vmatprep.mubr.bf16.mxu0 %v602
        %830 = vmatmul.mubr.bf16.gmra.mxu0 %v601
        %v831 = vpop.f32.mrf.mxu0
        %v832 = vadd.f32 0.0, %v831
        %v833 = vpop.f32.mrf.mxu0
        %v834 = vpop.f32.mrf.mxu0
        %v835 = vadd.f32 0.0, %v834
        %v836 = vpop.f32.mrf.mxu0
        %837 = vmatprep.mubr.bf16.mxu0 %v604
        %838 = vmatmul.mubr.bf16.gmra.mxu0 %v603
        %v839 = vpop.f32.mrf.mxu0
        %v840 = vadd.f32 0.0, %v839
        %v841 = vpop.f32.mrf.mxu0
        %v842 = vpop.f32.mrf.mxu0
        %v843 = vadd.f32 0.0, %v842
        %v844 = vpop.f32.mrf.mxu0
        %845 = vmatprep.mubr.bf16.mxu0 %v606
        %846 = vmatmul.mubr.bf16.gmra.mxu0 %v605
        %v847 = vpop.f32.mrf.mxu0
        %v848 = vadd.f32 0.0, %v847
        %v849 = vpop.f32.mrf.mxu0
        %v850 = vpop.f32.mrf.mxu0
        %v851 = vadd.f32 0.0, %v850
        %v852 = vpop.f32.mrf.mxu0
        %853 = vmatprep.mubr.bf16.mxu0 %v608
        %854 = vmatmul.mubr.bf16.gmra.mxu0 %v607
        %v855 = vpop.f32.mrf.mxu0
        %v856 = vadd.f32 0.0, %v855
        %v857 = vpop.f32.mrf.mxu0
        %v858 = vpop.f32.mrf.mxu0
        %v859 = vadd.f32 0.0, %v858
        %v860 = vpop.f32.mrf.mxu0
        %861 = vmatprep.mubr.bf16.mxu0 %v610
        %862 = vmatmul.mubr.bf16.gmra.mxu0 %v609
        %v863 = vpop.f32.mrf.mxu0
        %v864 = vadd.f32 0.0, %v863
        %v865 = vpop.f32.mrf.mxu0
        %v866 = vpop.f32.mrf.mxu0
        %v867 = vadd.f32 0.0, %v866
        %v868 = vpop.f32.mrf.mxu0
        %869 = vmatprep.mubr.bf16.mxu0 %v612
        %870 = vmatmul.mubr.bf16.gmra.mxu0 %v611
        %v871 = vpop.f32.mrf.mxu0
        %v872 = vadd.f32 0.0, %v871
        %v873 = vpop.f32.mrf.mxu0
        %v874 = vpop.f32.mrf.mxu0
        %v875 = vadd.f32 0.0, %v874
        %v876 = vpop.f32.mrf.mxu0
        %877 = vmatprep.mubr.bf16.mxu0 %v614
        %878 = vmatmul.mubr.bf16.gmra.mxu0 %v613
        %v879 = vpop.f32.mrf.mxu0
        %v880 = vadd.f32 0.0, %v879
        %v881 = vpop.f32.mrf.mxu0
        %v882 = vpop.f32.mrf.mxu0
        %v883 = vadd.f32 0.0, %v882
        %v884 = vpop.f32.mrf.mxu0
        %885 = vmatprep.mubr.bf16.mxu0 %v616
        %886 = vmatmul.mubr.bf16.gmra.mxu0 %v615
        %v887 = vpop.f32.mrf.mxu0
        %v888 = vadd.f32 0.0, %v887
        %v889 = vpop.f32.mrf.mxu0
        %v890 = vpop.f32.mrf.mxu0
        %v891 = vadd.f32 0.0, %v890
        %v892 = vpop.f32.mrf.mxu0
        %893 = vmatprep.mubr.bf16.mxu0 %v618
        %894 = vmatmul.mubr.bf16.gmra.mxu0 %v617
        %v895 = vpop.f32.mrf.mxu0
        %v896 = vadd.f32 0.0, %v895
        %v897 = vpop.f32.mrf.mxu0
        %v898 = vpop.f32.mrf.mxu0
        %v899 = vadd.f32 0.0, %v898
        %v900 = vpop.f32.mrf.mxu0
        %901 = vmatprep.mubr.bf16.mxu0 %v620
        %902 = vmatmul.mubr.bf16.gmra.mxu0 %v619
        %v903 = vpop.f32.mrf.mxu0
        %v904 = vadd.f32 0.0, %v903
        %v905 = vpop.f32.mrf.mxu0
        %v906 = vpop.f32.mrf.mxu0
        %v907 = vadd.f32 0.0, %v906
        %v908 = vpop.f32.mrf.mxu0
        %909 = vdwg.mxu0
        %v910 = vadd.f32 %v397, %v784
        %v911 = vadd.f32 %v398, %v787
        %v912 = vadd.f32 %v399, %v792
        %v913 = vadd.f32 %v400, %v795
        %v914 = vadd.f32 %v401, %v800
        %v915 = vadd.f32 %v402, %v803
        %v916 = vadd.f32 %v403, %v808
        %v917 = vadd.f32 %v404, %v811
        %v918 = vadd.f32 %v405, %v816
        %v919 = vadd.f32 %v406, %v819
        %v920 = vadd.f32 %v407, %v824
        %v921 = vadd.f32 %v408, %v827
        %v922 = vadd.f32 %v409, %v832
        %v923 = vadd.f32 %v410, %v835
        %v924 = vadd.f32 %v411, %v840
        %v925 = vadd.f32 %v412, %v843
        %v926 = vadd.f32 %v413, %v848
        %v927 = vadd.f32 %v414, %v851
        %v928 = vadd.f32 %v415, %v856
        %v929 = vadd.f32 %v416, %v859
        %v930 = vadd.f32 %v417, %v864
        %v931 = vadd.f32 %v418, %v867
        %v932 = vadd.f32 %v419, %v872
        %v933 = vadd.f32 %v420, %v875
        %v934 = vadd.f32 %v421, %v880
        %v935 = vadd.f32 %v422, %v883
        %v936 = vadd.f32 %v423, %v888
        %v937 = vadd.f32 %v424, %v891
        %v938 = vadd.f32 %v425, %v896
        %v939 = vadd.f32 %v426, %v899
        %v940 = vadd.f32 %v427, %v904
        %v941 = vadd.f32 %v428, %v907
        %942 = vst [vmem:[#allocation2] sm:$0xff] %v910
        %943 = vst [vmem:[#allocation2 + $0x8] sm:$0xff] %v911
        %944 = vst [vmem:[#allocation2 + $0x10] sm:$0xff] %v912
        %945 = vst [vmem:[#allocation2 + $0x18] sm:$0xff] %v913
        %946 = vst [vmem:[#allocation2 + $0x20] sm:$0xff] %v914
        %947 = vst [vmem:[#allocation2 + $0x28] sm:$0xff] %v915
        %948 = vst [vmem:[#allocation2 + $0x30] sm:$0xff] %v916
        %949 = vst [vmem:[#allocation2 + $0x38] sm:$0xff] %v917
        %950 = vst [vmem:[#allocation2 + $0x40] sm:$0xff] %v918
        %951 = vst [vmem:[#allocation2 + $0x48] sm:$0xff] %v919
        %952 = vst [vmem:[#allocation2 + $0x50] sm:$0xff] %v920
        %953 = vst [vmem:[#allocation2 + $0x58] sm:$0xff] %v921
        %954 = vst [vmem:[#allocation2 + $0x60] sm:$0xff] %v922
        %955 = vst [vmem:[#allocation2 + $0x68] sm:$0xff] %v923
        %956 = vst [vmem:[#allocation2 + $0x70] sm:$0xff] %v924
        %957 = vst [vmem:[#allocation2 + $0x78] sm:$0xff] %v925
        %958 = vst [vmem:[#allocation2 + $0x80] sm:$0xff] %v926
        %959 = vst [vmem:[#allocation2 + $0x88] sm:$0xff] %v927
        %960 = vst [vmem:[#allocation2 + $0x90] sm:$0xff] %v928
        %961 = vst [vmem:[#allocation2 + $0x98] sm:$0xff] %v929
        %962 = vst [vmem:[#allocation2 + $0xa0] sm:$0xff] %v930
        %963 = vst [vmem:[#allocation2 + $0xa8] sm:$0xff] %v931
        %964 = vst [vmem:[#allocation2 + $0xb0] sm:$0xff] %v932
        %965 = vst [vmem:[#allocation2 + $0xb8] sm:$0xff] %v933
        %966 = vst [vmem:[#allocation2 + $0xc0] sm:$0xff] %v934
        %967 = vst [vmem:[#allocation2 + $0xc8] sm:$0xff] %v935
        %968 = vst [vmem:[#allocation2 + $0xd0] sm:$0xff] %v936
        %969 = vst [vmem:[#allocation2 + $0xd8] sm:$0xff] %v937
        %970 = vst [vmem:[#allocation2 + $0xe0] sm:$0xff] %v938
        %971 = vst [vmem:[#allocation2 + $0xe8] sm:$0xff] %v939
        %972 = vst [vmem:[#allocation2 + $0xf0] sm:$0xff] %v940
        %973 = vst [vmem:[#allocation2 + $0xf8] sm:$0xff] %v941
        %p974 = scmp.eq.s32.totalorder %s32, 1
        // Predicated region
        $region65: #{tpu_custom_call.1} parent=43 // pred_check
          %p975 = pneg %p974
        $region66: #{tpu_custom_call.1} parent=43 // pred_check_branch
          %977 = sbr.rel (%p975) target = $region68
        $region67: #{tpu_custom_call.1} parent=43 // pred_region
          %v978 = vld [vmem:[#allocation2] sm:$0xff]
          %v979 = vld [vmem:[#allocation2 + $0x8] sm:$0xff]
          %v980 = vld [vmem:[#allocation2 + $0x10] sm:$0xff]
          %v981 = vld [vmem:[#allocation2 + $0x18] sm:$0xff]
          %v982 = vld [vmem:[#allocation2 + $0x20] sm:$0xff]
          %v983 = vld [vmem:[#allocation2 + $0x28] sm:$0xff]
          %v984 = vld [vmem:[#allocation2 + $0x30] sm:$0xff]
          %v985 = vld [vmem:[#allocation2 + $0x38] sm:$0xff]
          %v986 = vld [vmem:[#allocation2 + $0x40] sm:$0xff]
          %v987 = vld [vmem:[#allocation2 + $0x48] sm:$0xff]
          %v988 = vld [vmem:[#allocation2 + $0x50] sm:$0xff]
          %v989 = vld [vmem:[#allocation2 + $0x58] sm:$0xff]
          %v990 = vld [vmem:[#allocation2 + $0x60] sm:$0xff]
          %v991 = vld [vmem:[#allocation2 + $0x68] sm:$0xff]
          %v992 = vld [vmem:[#allocation2 + $0x70] sm:$0xff]
          %v993 = vld [vmem:[#allocation2 + $0x78] sm:$0xff]
          %v994 = vld [vmem:[#allocation2 + $0x80] sm:$0xff]
          %v995 = vld [vmem:[#allocation2 + $0x88] sm:$0xff]
          %v996 = vld [vmem:[#allocation2 + $0x90] sm:$0xff]
          %v997 = vld [vmem:[#allocation2 + $0x98] sm:$0xff]
          %v998 = vld [vmem:[#allocation2 + $0xa0] sm:$0xff]
          %v999 = vld [vmem:[#allocation2 + $0xa8] sm:$0xff]
          %v1000 = vld [vmem:[#allocation2 + $0xb0] sm:$0xff]
          %v1001 = vld [vmem:[#allocation2 + $0xb8] sm:$0xff]
          %v1002 = vld [vmem:[#allocation2 + $0xc0] sm:$0xff]
          %v1003 = vld [vmem:[#allocation2 + $0xc8] sm:$0xff]
          %v1004 = vld [vmem:[#allocation2 + $0xd0] sm:$0xff]
          %v1005 = vld [vmem:[#allocation2 + $0xd8] sm:$0xff]
          %v1006 = vld [vmem:[#allocation2 + $0xe0] sm:$0xff]
          %v1007 = vld [vmem:[#allocation2 + $0xe8] sm:$0xff]
          %v1008 = vld [vmem:[#allocation2 + $0xf0] sm:$0xff]
          %v1009 = vld [vmem:[#allocation2 + $0xf8] sm:$0xff]
          %v1010 = vpack.c.bf16 %v979, %v978
          %v1011 = vpack.c.bf16 %v981, %v980
          %v1012 = vpack.c.bf16 %v983, %v982
          %v1013 = vpack.c.bf16 %v985, %v984
          %v1014 = vpack.c.bf16 %v987, %v986
          %v1015 = vpack.c.bf16 %v989, %v988
          %v1016 = vpack.c.bf16 %v991, %v990
          %v1017 = vpack.c.bf16 %v993, %v992
          %v1018 = vpack.c.bf16 %v995, %v994
          %v1019 = vpack.c.bf16 %v997, %v996
          %v1020 = vpack.c.bf16 %v999, %v998
          %v1021 = vpack.c.bf16 %v1001, %v1000
          %v1022 = vpack.c.bf16 %v1003, %v1002
          %v1023 = vpack.c.bf16 %v1005, %v1004
          %v1024 = vpack.c.bf16 %v1007, %v1006
          %v1025 = vpack.c.bf16 %v1009, %v1008
          %v1026 = vld [vmem:[#allocation8] sm:$0xff]
          %v1027 = vld [vmem:[#allocation8 + $0x8] sm:$0xff]
          %v1028 = vld [vmem:[#allocation8 + $0x10] sm:$0xff]
          %v1029 = vld [vmem:[#allocation8 + $0x18] sm:$0xff]
          %v1030 = vld [vmem:[#allocation8 + $0x20] sm:$0xff]
          %v1031 = vld [vmem:[#allocation8 + $0x28] sm:$0xff]
          %v1032 = vld [vmem:[#allocation8 + $0x30] sm:$0xff]
          %v1033 = vld [vmem:[#allocation8 + $0x38] sm:$0xff]
          %v1034 = vld [vmem:[#allocation8 + $0x40] sm:$0xff]
          %v1035 = vld [vmem:[#allocation8 + $0x48] sm:$0xff]
          %v1036 = vld [vmem:[#allocation8 + $0x50] sm:$0xff]
          %v1037 = vld [vmem:[#allocation8 + $0x58] sm:$0xff]
          %v1038 = vld [vmem:[#allocation8 + $0x60] sm:$0xff]
          %v1039 = vld [vmem:[#allocation8 + $0x68] sm:$0xff]
          %v1040 = vld [vmem:[#allocation8 + $0x70] sm:$0xff]
          %v1041 = vld [vmem:[#allocation8 + $0x78] sm:$0xff]
          %v1042 = vld [vmem:[%s3] sm:$0x3]
          %v1044 = vlaneseq
          %v1045 = vshrl.u32 %v1044, 7
          %v1046 = vsub.s32 0, %v1045
          %v1047 = vrot.slane %v1042, %v1046
          %v1048 = vlaneseq
          %v1049 = vshrl.u32 %v1048, 7
          %v1050 = vsub.s32 1, %v1049
          %v1051 = vrot.slane %v1042, %v1050
          %v1070 = vunpack.c.l.b16 %v1026
          %v1071 = vunpack.c.h.b16 %v1026
          %v1072 = vunpack.c.l.b16 %v1027
          %v1073 = vunpack.c.h.b16 %v1027
          %v1074 = vunpack.c.l.b16 %v1028
          %v1075 = vunpack.c.h.b16 %v1028
          %v1076 = vunpack.c.l.b16 %v1029
          %v1077 = vunpack.c.h.b16 %v1029
          %v1078 = vunpack.c.l.b16 %v1030
          %v1079 = vunpack.c.h.b16 %v1030
          %v1080 = vunpack.c.l.b16 %v1031
          %v1081 = vunpack.c.h.b16 %v1031
          %v1082 = vunpack.c.l.b16 %v1032
          %v1083 = vunpack.c.h.b16 %v1032
          %v1084 = vunpack.c.l.b16 %v1033
          %v1085 = vunpack.c.h.b16 %v1033
          %v1086 = vunpack.c.l.b16 %v1034
          %v1087 = vunpack.c.h.b16 %v1034
          %v1088 = vunpack.c.l.b16 %v1035
          %v1089 = vunpack.c.h.b16 %v1035
          %v1090 = vunpack.c.l.b16 %v1036
          %v1091 = vunpack.c.h.b16 %v1036
          %v1092 = vunpack.c.l.b16 %v1037
          %v1093 = vunpack.c.h.b16 %v1037
          %v1094 = vunpack.c.l.b16 %v1038
          %v1095 = vunpack.c.h.b16 %v1038
          %v1096 = vunpack.c.l.b16 %v1039
          %v1097 = vunpack.c.h.b16 %v1039
          %v1098 = vunpack.c.l.b16 %v1040
          %v1099 = vunpack.c.h.b16 %v1040
          %v1100 = vunpack.c.l.b16 %v1041
          %v1101 = vunpack.c.h.b16 %v1041
          %v1102 = vpack.c.b16 %v1072, %v1070
          %v1103 = vpack.c.b16 %v1073, %v1071
          %v1104 = vpack.c.b16 %v1076, %v1074
          %v1105 = vpack.c.b16 %v1077, %v1075
          %v1106 = vpack.c.b16 %v1080, %v1078
          %v1107 = vpack.c.b16 %v1081, %v1079
          %v1108 = vpack.c.b16 %v1084, %v1082
          %v1109 = vpack.c.b16 %v1085, %v1083
          %v1110 = vpack.c.b16 %v1088, %v1086
          %v1111 = vpack.c.b16 %v1089, %v1087
          %v1112 = vpack.c.b16 %v1092, %v1090
          %v1113 = vpack.c.b16 %v1093, %v1091
          %v1114 = vpack.c.b16 %v1096, %v1094
          %v1115 = vpack.c.b16 %v1097, %v1095
          %v1116 = vpack.c.b16 %v1100, %v1098
          %v1117 = vpack.c.b16 %v1101, %v1099
          %1134 = vmatprep.subr.bf16.mxu0 %v1117
          %1135 = vmatpush1.bf16.msra.mxu0 %v1116
          %1136 = vmatprep.subr.bf16.mxu0 %v1115
          %1137 = vmatpush1.bf16.msra.mxu0 %v1114
          %1138 = vmatprep.subr.bf16.mxu0 %v1113
          %1139 = vmatpush1.bf16.msra.mxu0 %v1112
          %1140 = vmatprep.subr.bf16.mxu0 %v1111
          %1141 = vmatpush1.bf16.msra.mxu0 %v1110
          %1142 = vmatprep.subr.bf16.mxu0 %v1109
          %1143 = vmatpush1.bf16.msra.mxu0 %v1108
          %1144 = vmatprep.subr.bf16.mxu0 %v1107
          %1145 = vmatpush1.bf16.msra.mxu0 %v1106
          %1146 = vmatprep.subr.bf16.mxu0 %v1105
          %1147 = vmatpush1.bf16.msra.mxu0 %v1104
          %1148 = vmatprep.subr.bf16.mxu0 %v1103
          %1149 = vmatpush1.bf16.msra.mxu0 %v1102
          %1150 = vmatprep.subr.bf16.mxu0 0
          %1151 = vmatpush2.bf16.msra.mxu0 0
          %1152 = vmatprep.subr.bf16.mxu0 0
          %1153 = vmatpush2.bf16.msra.mxu0 0
          %1154 = vmatprep.subr.bf16.mxu0 0
          %1155 = vmatpush2.bf16.msra.mxu0 0
          %1156 = vmatprep.subr.bf16.mxu0 0
          %1157 = vmatpush2.bf16.msra.mxu0 0
          %1158 = vmatprep.subr.bf16.mxu0 0
          %1159 = vmatpush2.bf16.msra.mxu0 0
          %1160 = vmatprep.subr.bf16.mxu0 0
          %1161 = vmatpush2.bf16.msra.mxu0 0
          %1162 = vmatprep.subr.bf16.mxu0 0
          %1163 = vmatpush2.bf16.msra.mxu0 0
          %1164 = vmatprep.subr.bf16.mxu0 0
          %1165 = vmatpush2.bf16.msra.mxu0 0
          %1166 = vmatprep.mubr.bf16.mxu0 0
          %1167 = vmatmul.mubr.bf16.gmra.mxu0 %v1010
          %v1168 = vpop.f32.mrf.mxu0
          %v1169 = vadd.f32 %v1047, %v1168
          %v1170 = vpop.f32.mrf.mxu0
          %v1171 = vadd.f32 %v1051, %v1170
          %v1172 = vpop.f32.mrf.mxu0
          %v1173 = vadd.f32 %v1047, %v1172
          %v1174 = vpop.f32.mrf.mxu0
          %v1175 = vadd.f32 %v1051, %v1174
          %1176 = vmatprep.mubr.bf16.mxu0 0
          %1177 = vmatmul.mubr.bf16.gmra.mxu0 %v1011
          %v1178 = vpop.f32.mrf.mxu0
          %v1179 = vadd.f32 %v1047, %v1178
          %v1180 = vpop.f32.mrf.mxu0
          %v1181 = vadd.f32 %v1051, %v1180
          %v1182 = vpop.f32.mrf.mxu0
          %v1183 = vadd.f32 %v1047, %v1182
          %v1184 = vpop.f32.mrf.mxu0
          %v1185 = vadd.f32 %v1051, %v1184
          %1186 = vmatprep.mubr.bf16.mxu0 0
          %1187 = vmatmul.mubr.bf16.gmra.mxu0 %v1012
          %v1188 = vpop.f32.mrf.mxu0
          %v1189 = vadd.f32 %v1047, %v1188
          %v1190 = vpop.f32.mrf.mxu0
          %v1191 = vadd.f32 %v1051, %v1190
          %v1192 = vpop.f32.mrf.mxu0
          %v1193 = vadd.f32 %v1047, %v1192
          %v1194 = vpop.f32.mrf.mxu0
          %v1195 = vadd.f32 %v1051, %v1194
          %1196 = vmatprep.mubr.bf16.mxu0 0
          %1197 = vmatmul.mubr.bf16.gmra.mxu0 %v1013
          %v1198 = vpop.f32.mrf.mxu0
          %v1199 = vadd.f32 %v1047, %v1198
          %v1200 = vpop.f32.mrf.mxu0
          %v1201 = vadd.f32 %v1051, %v1200
          %v1202 = vpop.f32.mrf.mxu0
          %v1203 = vadd.f32 %v1047, %v1202
          %v1204 = vpop.f32.mrf.mxu0
          %v1205 = vadd.f32 %v1051, %v1204
          %1206 = vmatprep.mubr.bf16.mxu0 0
          %1207 = vmatmul.mubr.bf16.gmra.mxu0 %v1014
          %v1208 = vpop.f32.mrf.mxu0
          %v1209 = vadd.f32 %v1047, %v1208
          %v1210 = vpop.f32.mrf.mxu0
          %v1211 = vadd.f32 %v1051, %v1210
          %v1212 = vpop.f32.mrf.mxu0
          %v1213 = vadd.f32 %v1047, %v1212
          %v1214 = vpop.f32.mrf.mxu0
          %v1215 = vadd.f32 %v1051, %v1214
          %1216 = vmatprep.mubr.bf16.mxu0 0
          %1217 = vmatmul.mubr.bf16.gmra.mxu0 %v1015
          %v1218 = vpop.f32.mrf.mxu0
          %v1219 = vadd.f32 %v1047, %v1218
          %v1220 = vpop.f32.mrf.mxu0
          %v1221 = vadd.f32 %v1051, %v1220
          %v1222 = vpop.f32.mrf.mxu0
          %v1223 = vadd.f32 %v1047, %v1222
          %v1224 = vpop.f32.mrf.mxu0
          %v1225 = vadd.f32 %v1051, %v1224
          %1226 = vmatprep.mubr.bf16.mxu0 0
          %1227 = vmatmul.mubr.bf16.gmra.mxu0 %v1016
          %v1228 = vpop.f32.mrf.mxu0
          %v1229 = vadd.f32 %v1047, %v1228
          %v1230 = vpop.f32.mrf.mxu0
          %v1231 = vadd.f32 %v1051, %v1230
          %v1232 = vpop.f32.mrf.mxu0
          %v1233 = vadd.f32 %v1047, %v1232
          %v1234 = vpop.f32.mrf.mxu0
          %v1235 = vadd.f32 %v1051, %v1234
          %1236 = vmatprep.mubr.bf16.mxu0 0
          %1237 = vmatmul.mubr.bf16.gmra.mxu0 %v1017
          %v1238 = vpop.f32.mrf.mxu0
          %v1239 = vadd.f32 %v1047, %v1238
          %v1240 = vpop.f32.mrf.mxu0
          %v1241 = vadd.f32 %v1051, %v1240
          %v1242 = vpop.f32.mrf.mxu0
          %v1243 = vadd.f32 %v1047, %v1242
          %v1244 = vpop.f32.mrf.mxu0
          %v1245 = vadd.f32 %v1051, %v1244
          %1246 = vmatprep.mubr.bf16.mxu0 0
          %1247 = vmatmul.mubr.bf16.gmra.mxu0 %v1018
          %v1248 = vpop.f32.mrf.mxu0
          %v1249 = vadd.f32 %v1047, %v1248
          %v1250 = vpop.f32.mrf.mxu0
          %v1251 = vadd.f32 %v1051, %v1250
          %v1252 = vpop.f32.mrf.mxu0
          %v1253 = vadd.f32 %v1047, %v1252
          %v1254 = vpop.f32.mrf.mxu0
          %v1255 = vadd.f32 %v1051, %v1254
          %1256 = vmatprep.mubr.bf16.mxu0 0
          %1257 = vmatmul.mubr.bf16.gmra.mxu0 %v1019
          %v1258 = vpop.f32.mrf.mxu0
          %v1259 = vadd.f32 %v1047, %v1258
          %v1260 = vpop.f32.mrf.mxu0
          %v1261 = vadd.f32 %v1051, %v1260
          %v1262 = vpop.f32.mrf.mxu0
          %v1263 = vadd.f32 %v1047, %v1262
          %v1264 = vpop.f32.mrf.mxu0
          %v1265 = vadd.f32 %v1051, %v1264
          %1266 = vmatprep.mubr.bf16.mxu0 0
          %1267 = vmatmul.mubr.bf16.gmra.mxu0 %v1020
          %v1268 = vpop.f32.mrf.mxu0
          %v1269 = vadd.f32 %v1047, %v1268
          %v1270 = vpop.f32.mrf.mxu0
          %v1271 = vadd.f32 %v1051, %v1270
          %v1272 = vpop.f32.mrf.mxu0
          %v1273 = vadd.f32 %v1047, %v1272
          %v1274 = vpop.f32.mrf.mxu0
          %v1275 = vadd.f32 %v1051, %v1274
          %1276 = vmatprep.mubr.bf16.mxu0 0
          %1277 = vmatmul.mubr.bf16.gmra.mxu0 %v1021
          %v1278 = vpop.f32.mrf.mxu0
          %v1279 = vadd.f32 %v1047, %v1278
          %v1280 = vpop.f32.mrf.mxu0
          %v1281 = vadd.f32 %v1051, %v1280
          %v1282 = vpop.f32.mrf.mxu0
          %v1283 = vadd.f32 %v1047, %v1282
          %v1284 = vpop.f32.mrf.mxu0
          %v1285 = vadd.f32 %v1051, %v1284
          %1286 = vmatprep.mubr.bf16.mxu0 0
          %1287 = vmatmul.mubr.bf16.gmra.mxu0 %v1022
          %v1288 = vpop.f32.mrf.mxu0
          %v1289 = vadd.f32 %v1047, %v1288
          %v1290 = vpop.f32.mrf.mxu0
          %v1291 = vadd.f32 %v1051, %v1290
          %v1292 = vpop.f32.mrf.mxu0
          %v1293 = vadd.f32 %v1047, %v1292
          %v1294 = vpop.f32.mrf.mxu0
          %v1295 = vadd.f32 %v1051, %v1294
          %1296 = vmatprep.mubr.bf16.mxu0 0
          %1297 = vmatmul.mubr.bf16.gmra.mxu0 %v1023
          %v1298 = vpop.f32.mrf.mxu0
          %v1299 = vadd.f32 %v1047, %v1298
          %v1300 = vpop.f32.mrf.mxu0
          %v1301 = vadd.f32 %v1051, %v1300
          %v1302 = vpop.f32.mrf.mxu0
          %v1303 = vadd.f32 %v1047, %v1302
          %v1304 = vpop.f32.mrf.mxu0
          %v1305 = vadd.f32 %v1051, %v1304
          %1306 = vmatprep.mubr.bf16.mxu0 0
          %1307 = vmatmul.mubr.bf16.gmra.mxu0 %v1024
          %v1308 = vpop.f32.mrf.mxu0
          %v1309 = vadd.f32 %v1047, %v1308
          %v1310 = vpop.f32.mrf.mxu0
          %v1311 = vadd.f32 %v1051, %v1310
          %v1312 = vpop.f32.mrf.mxu0
          %v1313 = vadd.f32 %v1047, %v1312
          %v1314 = vpop.f32.mrf.mxu0
          %v1315 = vadd.f32 %v1051, %v1314
          %1316 = vmatprep.mubr.bf16.mxu0 0
          %1317 = vmatmul.mubr.bf16.gmra.mxu0 %v1025
          %v1318 = vpop.f32.mrf.mxu0
          %v1319 = vadd.f32 %v1047, %v1318
          %v1320 = vpop.f32.mrf.mxu0
          %v1321 = vadd.f32 %v1051, %v1320
          %v1322 = vpop.f32.mrf.mxu0
          %v1323 = vadd.f32 %v1047, %v1322
          %v1324 = vpop.f32.mrf.mxu0
          %v1325 = vadd.f32 %v1051, %v1324
          %1326 = vdwg.mxu0
          %v1327 = vmax.f32 %v1169, 0.0
          %v1328 = vmax.f32 %v1171, 0.0
          %v1329 = vmax.f32 %v1173, 0.0
          %v1330 = vmax.f32 %v1175, 0.0
          %v1331 = vmax.f32 %v1179, 0.0
          %v1332 = vmax.f32 %v1181, 0.0
          %v1333 = vmax.f32 %v1183, 0.0
          %v1334 = vmax.f32 %v1185, 0.0
          %v1335 = vmax.f32 %v1189, 0.0
          %v1336 = vmax.f32 %v1191, 0.0
          %v1337 = vmax.f32 %v1193, 0.0
          %v1338 = vmax.f32 %v1195, 0.0
          %v1339 = vmax.f32 %v1199, 0.0
          %v1340 = vmax.f32 %v1201, 0.0
          %v1341 = vmax.f32 %v1203, 0.0
          %v1342 = vmax.f32 %v1205, 0.0
          %v1343 = vmax.f32 %v1209, 0.0
          %v1344 = vmax.f32 %v1211, 0.0
          %v1345 = vmax.f32 %v1213, 0.0
          %v1346 = vmax.f32 %v1215, 0.0
          %v1347 = vmax.f32 %v1219, 0.0
          %v1348 = vmax.f32 %v1221, 0.0
          %v1349 = vmax.f32 %v1223, 0.0
          %v1350 = vmax.f32 %v1225, 0.0
          %v1351 = vmax.f32 %v1229, 0.0
          %v1352 = vmax.f32 %v1231, 0.0
          %v1353 = vmax.f32 %v1233, 0.0
          %v1354 = vmax.f32 %v1235, 0.0
          %v1355 = vmax.f32 %v1239, 0.0
          %v1356 = vmax.f32 %v1241, 0.0
          %v1357 = vmax.f32 %v1243, 0.0
          %v1358 = vmax.f32 %v1245, 0.0
          %v1359 = vmax.f32 %v1249, 0.0
          %v1360 = vmax.f32 %v1251, 0.0
          %v1361 = vmax.f32 %v1253, 0.0
          %v1362 = vmax.f32 %v1255, 0.0
          %v1363 = vmax.f32 %v1259, 0.0
          %v1364 = vmax.f32 %v1261, 0.0
          %v1365 = vmax.f32 %v1263, 0.0
          %v1366 = vmax.f32 %v1265, 0.0
          %v1367 = vmax.f32 %v1269, 0.0
          %v1368 = vmax.f32 %v1271, 0.0
          %v1369 = vmax.f32 %v1273, 0.0
          %v1370 = vmax.f32 %v1275, 0.0
          %v1371 = vmax.f32 %v1279, 0.0
          %v1372 = vmax.f32 %v1281, 0.0
          %v1373 = vmax.f32 %v1283, 0.0
          %v1374 = vmax.f32 %v1285, 0.0
          %v1375 = vmax.f32 %v1289, 0.0
          %v1376 = vmax.f32 %v1291, 0.0
          %v1377 = vmax.f32 %v1293, 0.0
          %v1378 = vmax.f32 %v1295, 0.0
          %v1379 = vmax.f32 %v1299, 0.0
          %v1380 = vmax.f32 %v1301, 0.0
          %v1381 = vmax.f32 %v1303, 0.0
          %v1382 = vmax.f32 %v1305, 0.0
          %v1383 = vmax.f32 %v1309, 0.0
          %v1384 = vmax.f32 %v1311, 0.0
          %v1385 = vmax.f32 %v1313, 0.0
          %v1386 = vmax.f32 %v1315, 0.0
          %v1387 = vmax.f32 %v1319, 0.0
          %v1388 = vmax.f32 %v1321, 0.0
          %v1389 = vmax.f32 %v1323, 0.0
          %v1390 = vmax.f32 %v1325, 0.0
          %v1391 = vpack.c.bf16 %v1329, %v1327
          %v1392 = vpack.c.bf16 %v1330, %v1328
          %v1393 = vpack.c.bf16 %v1333, %v1331
          %v1394 = vpack.c.bf16 %v1334, %v1332
          %v1395 = vpack.c.bf16 %v1337, %v1335
          %v1396 = vpack.c.bf16 %v1338, %v1336
          %v1397 = vpack.c.bf16 %v1341, %v1339
          %v1398 = vpack.c.bf16 %v1342, %v1340
          %v1399 = vpack.c.bf16 %v1345, %v1343
          %v1400 = vpack.c.bf16 %v1346, %v1344
          %v1401 = vpack.c.bf16 %v1349, %v1347
          %v1402 = vpack.c.bf16 %v1350, %v1348
          %v1403 = vpack.c.bf16 %v1353, %v1351
          %v1404 = vpack.c.bf16 %v1354, %v1352
          %v1405 = vpack.c.bf16 %v1357, %v1355
          %v1406 = vpack.c.bf16 %v1358, %v1356
          %v1407 = vpack.c.bf16 %v1361, %v1359
          %v1408 = vpack.c.bf16 %v1362, %v1360
          %v1409 = vpack.c.bf16 %v1365, %v1363
          %v1410 = vpack.c.bf16 %v1366, %v1364
          %v1411 = vpack.c.bf16 %v1369, %v1367
          %v1412 = vpack.c.bf16 %v1370, %v1368
          %v1413 = vpack.c.bf16 %v1373, %v1371
          %v1414 = vpack.c.bf16 %v1374, %v1372
          %v1415 = vpack.c.bf16 %v1377, %v1375
          %v1416 = vpack.c.bf16 %v1378, %v1376
          %v1417 = vpack.c.bf16 %v1381, %v1379
          %v1418 = vpack.c.bf16 %v1382, %v1380
          %v1419 = vpack.c.bf16 %v1385, %v1383
          %v1420 = vpack.c.bf16 %v1386, %v1384
          %v1421 = vpack.c.bf16 %v1389, %v1387
          %v1422 = vpack.c.bf16 %v1390, %v1388
          %v1423 = vld [vmem:[#allocation9] sm:$0xf]
          %v1424 = vld [vmem:[#allocation9 + $0x4] sm:$0xf]
          %v1425 = vld [vmem:[#allocation9 + $0x8] sm:$0xf]
          %v1426 = vld [vmem:[#allocation9 + $0xc] sm:$0xf]
          %v1427 = vld [vmem:[#allocation9 + $0x10] sm:$0xf]
          %v1428 = vld [vmem:[#allocation9 + $0x14] sm:$0xf]
          %v1429 = vld [vmem:[#allocation9 + $0x18] sm:$0xf]
          %v1430 = vld [vmem:[#allocation9 + $0x1c] sm:$0xf]
          %v1431 = vld [vmem:[#allocation9 + $0x20] sm:$0xf]
          %v1432 = vld [vmem:[#allocation9 + $0x24] sm:$0xf]
          %v1433 = vld [vmem:[#allocation9 + $0x28] sm:$0xf]
          %v1434 = vld [vmem:[#allocation9 + $0x2c] sm:$0xf]
          %v1435 = vld [vmem:[#allocation9 + $0x30] sm:$0xf]
          %v1436 = vld [vmem:[#allocation9 + $0x34] sm:$0xf]
          %v1437 = vld [vmem:[#allocation9 + $0x38] sm:$0xf]
          %v1438 = vld [vmem:[#allocation9 + $0x3c] sm:$0xf]
          %v1439 = vld [vmem:[#allocation9 + $0x40] sm:$0xf]
          %v1440 = vld [vmem:[#allocation9 + $0x44] sm:$0xf]
          %v1441 = vld [vmem:[#allocation9 + $0x48] sm:$0xf]
          %v1442 = vld [vmem:[#allocation9 + $0x4c] sm:$0xf]
          %v1443 = vld [vmem:[#allocation9 + $0x50] sm:$0xf]
          %v1444 = vld [vmem:[#allocation9 + $0x54] sm:$0xf]
          %v1445 = vld [vmem:[#allocation9 + $0x58] sm:$0xf]
          %v1446 = vld [vmem:[#allocation9 + $0x5c] sm:$0xf]
          %v1447 = vld [vmem:[#allocation9 + $0x60] sm:$0xf]
          %v1448 = vld [vmem:[#allocation9 + $0x64] sm:$0xf]
          %v1449 = vld [vmem:[#allocation9 + $0x68] sm:$0xf]
          %v1450 = vld [vmem:[#allocation9 + $0x6c] sm:$0xf]
          %v1451 = vld [vmem:[#allocation9 + $0x70] sm:$0xf]
          %v1452 = vld [vmem:[#allocation9 + $0x74] sm:$0xf]
          %v1453 = vld [vmem:[#allocation9 + $0x78] sm:$0xf]
          %v1454 = vld [vmem:[#allocation9 + $0x7c] sm:$0xf]
          %v1455 = vld [vmem:[%s5] sm:$0x1]
          %v1457 = vlaneseq
          %v1458 = vshrl.u32 %v1457, 7
          %v1459 = vsub.s32 0, %v1458
          %v1460 = vrot.slane %v1455, %v1459
          %v1494 = vunpack.c.l.b16 %v1423
          %v1495 = vunpack.c.l.b16 %v1424
          %v1496 = vunpack.c.l.b16 %v1425
          %v1497 = vunpack.c.l.b16 %v1426
          %v1498 = vunpack.c.l.b16 %v1427
          %v1499 = vunpack.c.l.b16 %v1428
          %v1500 = vunpack.c.l.b16 %v1429
          %v1501 = vunpack.c.l.b16 %v1430
          %v1502 = vunpack.c.l.b16 %v1431
          %v1503 = vunpack.c.l.b16 %v1432
          %v1504 = vunpack.c.l.b16 %v1433
          %v1505 = vunpack.c.l.b16 %v1434
          %v1506 = vunpack.c.l.b16 %v1435
          %v1507 = vunpack.c.l.b16 %v1436
          %v1508 = vunpack.c.l.b16 %v1437
          %v1509 = vunpack.c.l.b16 %v1438
          %v1510 = vunpack.c.l.b16 %v1439
          %v1511 = vunpack.c.l.b16 %v1440
          %v1512 = vunpack.c.l.b16 %v1441
          %v1513 = vunpack.c.l.b16 %v1442
          %v1514 = vunpack.c.l.b16 %v1443
          %v1515 = vunpack.c.l.b16 %v1444
          %v1516 = vunpack.c.l.b16 %v1445
          %v1517 = vunpack.c.l.b16 %v1446
          %v1518 = vunpack.c.l.b16 %v1447
          %v1519 = vunpack.c.l.b16 %v1448
          %v1520 = vunpack.c.l.b16 %v1449
          %v1521 = vunpack.c.l.b16 %v1450
          %v1522 = vunpack.c.l.b16 %v1451
          %v1523 = vunpack.c.l.b16 %v1452
          %v1524 = vunpack.c.l.b16 %v1453
          %v1525 = vunpack.c.l.b16 %v1454
          %v1526 = vpack.c.b16 %v1495, %v1494
          %v1527 = vpack.c.b16 %v1497, %v1496
          %v1528 = vpack.c.b16 %v1499, %v1498
          %v1529 = vpack.c.b16 %v1501, %v1500
          %v1530 = vpack.c.b16 %v1503, %v1502
          %v1531 = vpack.c.b16 %v1505, %v1504
          %v1532 = vpack.c.b16 %v1507, %v1506
          %v1533 = vpack.c.b16 %v1509, %v1508
          %v1534 = vpack.c.b16 %v1511, %v1510
          %v1535 = vpack.c.b16 %v1513, %v1512
          %v1536 = vpack.c.b16 %v1515, %v1514
          %v1537 = vpack.c.b16 %v1517, %v1516
          %v1538 = vpack.c.b16 %v1519, %v1518
          %v1539 = vpack.c.b16 %v1521, %v1520
          %v1540 = vpack.c.b16 %v1523, %v1522
          %v1541 = vpack.c.b16 %v1525, %v1524
          %1558 = vmatprep.subr.bf16.mxu0 0
          %1559 = vmatpush1.bf16.msra.mxu0 %v1533
          %1560 = vmatprep.subr.bf16.mxu0 0
          %1561 = vmatpush1.bf16.msra.mxu0 %v1532
          %1562 = vmatprep.subr.bf16.mxu0 0
          %1563 = vmatpush1.bf16.msra.mxu0 %v1531
          %1564 = vmatprep.subr.bf16.mxu0 0
          %1565 = vmatpush1.bf16.msra.mxu0 %v1530
          %1566 = vmatprep.subr.bf16.mxu0 0
          %1567 = vmatpush1.bf16.msra.mxu0 %v1529
          %1568 = vmatprep.subr.bf16.mxu0 0
          %1569 = vmatpush1.bf16.msra.mxu0 %v1528
          %1570 = vmatprep.subr.bf16.mxu0 0
          %1571 = vmatpush1.bf16.msra.mxu0 %v1527
          %1572 = vmatprep.subr.bf16.mxu0 0
          %1573 = vmatpush1.bf16.msra.mxu0 %v1526
          %1574 = vmatprep.subr.bf16.mxu0 0
          %1575 = vmatpush2.bf16.msra.mxu0 %v1541
          %1576 = vmatprep.subr.bf16.mxu0 0
          %1577 = vmatpush2.bf16.msra.mxu0 %v1540
          %1578 = vmatprep.subr.bf16.mxu0 0
          %1579 = vmatpush2.bf16.msra.mxu0 %v1539
          %1580 = vmatprep.subr.bf16.mxu0 0
          %1581 = vmatpush2.bf16.msra.mxu0 %v1538
          %1582 = vmatprep.subr.bf16.mxu0 0
          %1583 = vmatpush2.bf16.msra.mxu0 %v1537
          %1584 = vmatprep.subr.bf16.mxu0 0
          %1585 = vmatpush2.bf16.msra.mxu0 %v1536
          %1586 = vmatprep.subr.bf16.mxu0 0
          %1587 = vmatpush2.bf16.msra.mxu0 %v1535
          %1588 = vmatprep.subr.bf16.mxu0 0
          %1589 = vmatpush2.bf16.msra.mxu0 %v1534
          %1590 = vmatprep.mubr.bf16.mxu0 %v1392
          %1591 = vmatmul.mubr.bf16.gmra.mxu0 %v1391
          %v1592 = vpop.f32.mrf.mxu0
          %v1593 = vadd.f32 %v1460, %v1592
          %v1594 = vpop.f32.mrf.mxu0
          %v1595 = vpop.f32.mrf.mxu0
          %v1596 = vadd.f32 %v1460, %v1595
          %v1597 = vpop.f32.mrf.mxu0
          %1598 = vmatprep.mubr.bf16.mxu0 %v1394
          %1599 = vmatmul.mubr.bf16.gmra.mxu0 %v1393
          %v1600 = vpop.f32.mrf.mxu0
          %v1601 = vadd.f32 %v1460, %v1600
          %v1602 = vpop.f32.mrf.mxu0
          %v1603 = vpop.f32.mrf.mxu0
          %v1604 = vadd.f32 %v1460, %v1603
          %v1605 = vpop.f32.mrf.mxu0
          %1606 = vmatprep.mubr.bf16.mxu0 %v1396
          %1607 = vmatmul.mubr.bf16.gmra.mxu0 %v1395
          %v1608 = vpop.f32.mrf.mxu0
          %v1609 = vadd.f32 %v1460, %v1608
          %v1610 = vpop.f32.mrf.mxu0
          %v1611 = vpop.f32.mrf.mxu0
          %v1612 = vadd.f32 %v1460, %v1611
          %v1613 = vpop.f32.mrf.mxu0
          %1614 = vmatprep.mubr.bf16.mxu0 %v1398
          %1615 = vmatmul.mubr.bf16.gmra.mxu0 %v1397
          %v1616 = vpop.f32.mrf.mxu0
          %v1617 = vadd.f32 %v1460, %v1616
          %v1618 = vpop.f32.mrf.mxu0
          %v1619 = vpop.f32.mrf.mxu0
          %v1620 = vadd.f32 %v1460, %v1619
          %v1621 = vpop.f32.mrf.mxu0
          %1622 = vmatprep.mubr.bf16.mxu0 %v1400
          %1623 = vmatmul.mubr.bf16.gmra.mxu0 %v1399
          %v1624 = vpop.f32.mrf.mxu0
          %v1625 = vadd.f32 %v1460, %v1624
          %v1626 = vpop.f32.mrf.mxu0
          %v1627 = vpop.f32.mrf.mxu0
          %v1628 = vadd.f32 %v1460, %v1627
          %v1629 = vpop.f32.mrf.mxu0
          %1630 = vmatprep.mubr.bf16.mxu0 %v1402
          %1631 = vmatmul.mubr.bf16.gmra.mxu0 %v1401
          %v1632 = vpop.f32.mrf.mxu0
          %v1633 = vadd.f32 %v1460, %v1632
          %v1634 = vpop.f32.mrf.mxu0
          %v1635 = vpop.f32.mrf.mxu0
          %v1636 = vadd.f32 %v1460, %v1635
          %v1637 = vpop.f32.mrf.mxu0
          %1638 = vmatprep.mubr.bf16.mxu0 %v1404
          %1639 = vmatmul.mubr.bf16.gmra.mxu0 %v1403
          %v1640 = vpop.f32.mrf.mxu0
          %v1641 = vadd.f32 %v1460, %v1640
          %v1642 = vpop.f32.mrf.mxu0
          %v1643 = vpop.f32.mrf.mxu0
          %v1644 = vadd.f32 %v1460, %v1643
          %v1645 = vpop.f32.mrf.mxu0
          %1646 = vmatprep.mubr.bf16.mxu0 %v1406
          %1647 = vmatmul.mubr.bf16.gmra.mxu0 %v1405
          %v1648 = vpop.f32.mrf.mxu0
          %v1649 = vadd.f32 %v1460, %v1648
          %v1650 = vpop.f32.mrf.mxu0
          %v1651 = vpop.f32.mrf.mxu0
          %v1652 = vadd.f32 %v1460, %v1651
          %v1653 = vpop.f32.mrf.mxu0
          %1654 = vmatprep.mubr.bf16.mxu0 %v1408
          %1655 = vmatmul.mubr.bf16.gmra.mxu0 %v1407
          %v1656 = vpop.f32.mrf.mxu0
          %v1657 = vadd.f32 %v1460, %v1656
          %v1658 = vpop.f32.mrf.mxu0
          %v1659 = vpop.f32.mrf.mxu0
          %v1660 = vadd.f32 %v1460, %v1659
          %v1661 = vpop.f32.mrf.mxu0
          %1662 = vmatprep.mubr.bf16.mxu0 %v1410
          %1663 = vmatmul.mubr.bf16.gmra.mxu0 %v1409
          %v1664 = vpop.f32.mrf.mxu0
          %v1665 = vadd.f32 %v1460, %v1664
          %v1666 = vpop.f32.mrf.mxu0
          %v1667 = vpop.f32.mrf.mxu0
          %v1668 = vadd.f32 %v1460, %v1667
          %v1669 = vpop.f32.mrf.mxu0
          %1670 = vmatprep.mubr.bf16.mxu0 %v1412
          %1671 = vmatmul.mubr.bf16.gmra.mxu0 %v1411
          %v1672 = vpop.f32.mrf.mxu0
          %v1673 = vadd.f32 %v1460, %v1672
          %v1674 = vpop.f32.mrf.mxu0
          %v1675 = vpop.f32.mrf.mxu0
          %v1676 = vadd.f32 %v1460, %v1675
          %v1677 = vpop.f32.mrf.mxu0
          %1678 = vmatprep.mubr.bf16.mxu0 %v1414
          %1679 = vmatmul.mubr.bf16.gmra.mxu0 %v1413
          %v1680 = vpop.f32.mrf.mxu0
          %v1681 = vadd.f32 %v1460, %v1680
          %v1682 = vpop.f32.mrf.mxu0
          %v1683 = vpop.f32.mrf.mxu0
          %v1684 = vadd.f32 %v1460, %v1683
          %v1685 = vpop.f32.mrf.mxu0
          %1686 = vmatprep.mubr.bf16.mxu0 %v1416
          %1687 = vmatmul.mubr.bf16.gmra.mxu0 %v1415
          %v1688 = vpop.f32.mrf.mxu0
          %v1689 = vadd.f32 %v1460, %v1688
          %v1690 = vpop.f32.mrf.mxu0
          %v1691 = vpop.f32.mrf.mxu0
          %v1692 = vadd.f32 %v1460, %v1691
          %v1693 = vpop.f32.mrf.mxu0
          %1694 = vmatprep.mubr.bf16.mxu0 %v1418
          %1695 = vmatmul.mubr.bf16.gmra.mxu0 %v1417
          %v1696 = vpop.f32.mrf.mxu0
          %v1697 = vadd.f32 %v1460, %v1696
          %v1698 = vpop.f32.mrf.mxu0
          %v1699 = vpop.f32.mrf.mxu0
          %v1700 = vadd.f32 %v1460, %v1699
          %v1701 = vpop.f32.mrf.mxu0
          %1702 = vmatprep.mubr.bf16.mxu0 %v1420
          %1703 = vmatmul.mubr.bf16.gmra.mxu0 %v1419
          %v1704 = vpop.f32.mrf.mxu0
          %v1705 = vadd.f32 %v1460, %v1704
          %v1706 = vpop.f32.mrf.mxu0
          %v1707 = vpop.f32.mrf.mxu0
          %v1708 = vadd.f32 %v1460, %v1707
          %v1709 = vpop.f32.mrf.mxu0
          %1710 = vmatprep.mubr.bf16.mxu0 %v1422
          %1711 = vmatmul.mubr.bf16.gmra.mxu0 %v1421
          %v1712 = vpop.f32.mrf.mxu0
          %v1713 = vadd.f32 %v1460, %v1712
          %v1714 = vpop.f32.mrf.mxu0
          %v1715 = vpop.f32.mrf.mxu0
          %v1716 = vadd.f32 %v1460, %v1715
          %v1717 = vpop.f32.mrf.mxu0
          %1718 = vdwg.mxu0
          %v1719 = vmax.f32 %v1593, 0.0
          %v1720 = vmax.f32 %v1596, 0.0
          %v1721 = vmax.f32 %v1601, 0.0
          %v1722 = vmax.f32 %v1604, 0.0
          %v1723 = vmax.f32 %v1609, 0.0
          %v1724 = vmax.f32 %v1612, 0.0
          %v1725 = vmax.f32 %v1617, 0.0
          %v1726 = vmax.f32 %v1620, 0.0
          %v1727 = vmax.f32 %v1625, 0.0
          %v1728 = vmax.f32 %v1628, 0.0
          %v1729 = vmax.f32 %v1633, 0.0
          %v1730 = vmax.f32 %v1636, 0.0
          %v1731 = vmax.f32 %v1641, 0.0
          %v1732 = vmax.f32 %v1644, 0.0
          %v1733 = vmax.f32 %v1649, 0.0
          %v1734 = vmax.f32 %v1652, 0.0
          %v1735 = vmax.f32 %v1657, 0.0
          %v1736 = vmax.f32 %v1660, 0.0
          %v1737 = vmax.f32 %v1665, 0.0
          %v1738 = vmax.f32 %v1668, 0.0
          %v1739 = vmax.f32 %v1673, 0.0
          %v1740 = vmax.f32 %v1676, 0.0
          %v1741 = vmax.f32 %v1681, 0.0
          %v1742 = vmax.f32 %v1684, 0.0
          %v1743 = vmax.f32 %v1689, 0.0
          %v1744 = vmax.f32 %v1692, 0.0
          %v1745 = vmax.f32 %v1697, 0.0
          %v1746 = vmax.f32 %v1700, 0.0
          %v1747 = vmax.f32 %v1705, 0.0
          %v1748 = vmax.f32 %v1708, 0.0
          %v1749 = vmax.f32 %v1713, 0.0
          %v1750 = vmax.f32 %v1716, 0.0
          %1751 = vst [vmem:[%s355] sm:$0xff] %v1719
          %1752 = vst [vmem:[%s355 + $0x8] sm:$0xff] %v1720
          %1753 = vst [vmem:[%s355 + $0x10] sm:$0xff] %v1721
          %1754 = vst [vmem:[%s355 + $0x18] sm:$0xff] %v1722
          %1755 = vst [vmem:[%s355 + $0x20] sm:$0xff] %v1723
          %1756 = vst [vmem:[%s355 + $0x28] sm:$0xff] %v1724
          %1757 = vst [vmem:[%s355 + $0x30] sm:$0xff] %v1725
          %1758 = vst [vmem:[%s355 + $0x38] sm:$0xff] %v1726
          %1759 = vst [vmem:[%s355 + $0x40] sm:$0xff] %v1727
          %1760 = vst [vmem:[%s355 + $0x48] sm:$0xff] %v1728
          %1761 = vst [vmem:[%s355 + $0x50] sm:$0xff] %v1729
          %1762 = vst [vmem:[%s355 + $0x58] sm:$0xff] %v1730
          %1763 = vst [vmem:[%s355 + $0x60] sm:$0xff] %v1731
          %1764 = vst [vmem:[%s355 + $0x68] sm:$0xff] %v1732
          %1765 = vst [vmem:[%s355 + $0x70] sm:$0xff] %v1733
          %1766 = vst [vmem:[%s355 + $0x78] sm:$0xff] %v1734
          %1767 = vst [vmem:[%s355 + $0x80] sm:$0xff] %v1735
          %1768 = vst [vmem:[%s355 + $0x88] sm:$0xff] %v1736
          %1769 = vst [vmem:[%s355 + $0x90] sm:$0xff] %v1737
          %1770 = vst [vmem:[%s355 + $0x98] sm:$0xff] %v1738
          %1771 = vst [vmem:[%s355 + $0xa0] sm:$0xff] %v1739
          %1772 = vst [vmem:[%s355 + $0xa8] sm:$0xff] %v1740
          %1773 = vst [vmem:[%s355 + $0xb0] sm:$0xff] %v1741
          %1774 = vst [vmem:[%s355 + $0xb8] sm:$0xff] %v1742
          %1775 = vst [vmem:[%s355 + $0xc0] sm:$0xff] %v1743
          %1776 = vst [vmem:[%s355 + $0xc8] sm:$0xff] %v1744
          %1777 = vst [vmem:[%s355 + $0xd0] sm:$0xff] %v1745
          %1778 = vst [vmem:[%s355 + $0xd8] sm:$0xff] %v1746
          %1779 = vst [vmem:[%s355 + $0xe0] sm:$0xff] %v1747
          %1780 = vst [vmem:[%s355 + $0xe8] sm:$0xff] %v1748
          %1781 = vst [vmem:[%s355 + $0xf0] sm:$0xff] %v1749
          %1782 = vst [vmem:[%s355 + $0xf8] sm:$0xff] %v1750
        $region68: #{tpu_custom_call.1} parent=43 // pred_fallthru
          _
        %s1783 = sand.u32 %s185, 1
        %s1784 = scalar_lea.sflag [#allocation5], %s1783
        %s1785 = sand.u32 %s185, 1
        %s1786 = smul.addr %s1785, 256
        %s1787 = scalar_lea.vmem [#allocation11], %s1786
        // Predicated region
        $region69: #{tpu_custom_call.1} parent=43 // pred_check
          %p1788 = pneg %p195
        $region70: #{tpu_custom_call.1} parent=43 // pred_check_branch
          %1790 = sbr.rel (%p1788) target = $region72
        $region71: #{tpu_custom_call.1} parent=43 // pred_region
          %s1791 = smul.u32 32, %s31
          %s1793 = ssub.s32 4096, 4096
          %1794 = vsyncadd %s1784, %s1793
          %s1795 = smul.addr %s1791, 128
          %s1796 = scalar_lea.hbm %s6, %s1795
          %s1797 = sshll.u32 %s1787, 4
          %s1798 = int_to_ptr.vmem [resolvable:$true] %s1797
          %1803 = dma.vmem_to_hbm [thread:$0]  %s1798, 4096, %s1796, %s1784, 128, 128, 8
        $region72: #{tpu_custom_call.1} parent=43 // pred_fallthru
          _
      $region44: #{tpu_custom_call.1} parent=5 // pred_fallthru
        _
      %p1804 = scmp.le.s32.totalorder 2, %s22
      // Predicated region
      $region73: #{tpu_custom_call.1} parent=5 // pred_check
        %p1805 = pneg %p1804
      $region74: #{tpu_custom_call.1} parent=5 // pred_check_branch
        %1807 = sbr.rel (%p1805) target = $region76
      $region75: #{tpu_custom_call.1} parent=5 // pred_region
        %s1808 = ssub.s32 %s22, 2
        // Predicated region
        $region77: #{tpu_custom_call.1} parent=75 // pred_check
          %p1809 = pneg %p201
        $region78: #{tpu_custom_call.1} parent=75 // pred_check_branch
          %1811 = sbr.rel (%p1809) target = $region80
        $region79: #{tpu_custom_call.1} parent=75 // pred_region
          %s1812 = sand.u32 %s186, 1
          %s1813 = scalar_lea.sflag [#allocation5], %s1812
          %s1814 = sand.u32 %s186, 1
          %s1815 = smul.addr %s1814, 256
          %s1816 = scalar_lea.vmem [#allocation11], %s1815
          %1817 = dma.done %s1813, 4096
        $region80: #{tpu_custom_call.1} parent=75 // pred_fallthru
          _
      $region76: #{tpu_custom_call.1} parent=5 // pred_fallthru
        _
    $region6: #{tpu_custom_call.1} parent=1 // loop_footer
      %s26 = sadd.s32 1, %s22
    $region7: #{tpu_custom_call.1} parent=1 // loop_footer_branch
      %21 = sbr.rel target = $region3
    $region8: #{tpu_custom_call.1} parent=1 // loop_exit
      _
    %1818 = vsyncpa [#allocation4], 1
    %s1819 = scalar_lea.sflag [#allocation4], 1
    %1820 = vsyncpa %s1819, 1
    %1821 = vsyncpa [#allocation7], 1
    %s1822 = scalar_lea.sflag [#allocation7], 1
    %1823 = vsyncpa %s1822, 1
    %1824 = vsyncpa [#allocation10], 1
    %1825 = vsyncpa [#allocation5], 1
    %s1826 = scalar_lea.sflag [#allocation5], 1
    %1827 = vsyncpa %s1826, 1

</llo_original>
